<compile_context>
chip_gen: v7x
topology: tpu7x:2x2x1
jax: 0.10.0
libtpu: 0.0.40
codegen_flags: <defaults>
</compile_context>

<pallas_src>
from functools import partial

import jax
import jax.numpy as jnp
from jax.experimental import pallas as pl
from jax.experimental.pallas import tpu as pltpu


def mab_kernel(q_ref, k_ref, w_ref, vec_ref, out_ref, *, batch, lq, lk, heads, eps):
    """Whole (B, Lq, E) problem in one step.

    q_ref   : (B*Lq, E)   flattened query
    k_ref   : (B*Lk, E)   flattened key (= value input)
    w_ref   : (5, E, E)   [Wq^T, Wk^T, Wv^T, Wo^T, Wf^T]  (already (in, out))
    vec_ref : (9, E)      rows: bq, bk, bv, bo, bf, ln1_g, ln1_b, ln2_g, ln2_b
    out_ref : (B*Lq, E)
    """
    e = q_ref.shape[-1]
    d = e // heads
    scale = 1.0 / (d ** 0.5)

    bq = vec_ref[0:1, :]
    bk = vec_ref[1:2, :]
    bv = vec_ref[2:3, :]
    bo = vec_ref[3:4, :]
    bf = vec_ref[4:5, :]
    g1 = vec_ref[5:6, :]
    b1 = vec_ref[6:7, :]
    g2 = vec_ref[7:8, :]
    b2 = vec_ref[8:9, :]

    q_in = q_ref[...]                       # (B*Lq, E)
    k_in = k_ref[...]                       # (B*Lk, E)

    # Fused full-width projections over the whole flattened batch (MXU work
    # with lane width E instead of per-head D).
    qp = jnp.dot(q_in, w_ref[0], preferred_element_type=jnp.float32) + bq
    kp = jnp.dot(k_in, w_ref[1], preferred_element_type=jnp.float32) + bk
    vp = jnp.dot(k_in, w_ref[2], preferred_element_type=jnp.float32) + bv

    wo_t = w_ref[3]                         # (E, E), rows grouped per head

    # Contract the last axis of both operands: qb @ kb^T with no transpose op.
    nt_dims = (((1,), (1,)), ((), ()))

    # Attention output accumulated per batch element; the head merge + output
    # projection is rewritten as sum_h o_h @ Wo^T[h*D:(h+1)*D, :]  (== concat
    # of heads @ Wo^T), i.e. pure MXU work, no cross-lane concatenates.
    acc = [None] * batch
    for h in range(heads):                  # static unrolled loops (tiny B, H)
        qh = qp[:, h * d:(h + 1) * d]       # (B*Lq, D) lane slice, once per head
        kh = kp[:, h * d:(h + 1) * d]       # (B*Lk, D)
        vh = vp[:, h * d:(h + 1) * d]       # (B*Lk, D)
        wo_h = wo_t[h * d:(h + 1) * d, :]   # (D, E) sublane slice (free)
        for b in range(batch):
            qb = qh[b * lq:(b + 1) * lq, :]     # (Lq, D) sublane row slice
            kb = kh[b * lk:(b + 1) * lk, :]     # (Lk, D)
            vb = vh[b * lk:(b + 1) * lk, :]     # (Lk, D)
            s = jax.lax.dot_general(qb, kb, nt_dims,
                                    preferred_element_type=jnp.float32) * scale
            p = jnp.exp(s - jnp.max(s, axis=-1, keepdims=True))
            o = jnp.dot(p, vb, preferred_element_type=jnp.float32)   # (Lq, D)
            # Deferred softmax normalization on the (Lq, 1) row-sum.
            o = o * pl.reciprocal(jnp.sum(p, axis=-1, keepdims=True), approx=False)
            c = jnp.dot(o, wo_h, preferred_element_type=jnp.float32)  # (Lq, E)
            acc[b] = c if acc[b] is None else acc[b] + c

    attn = jnp.concatenate(acc, axis=0) + bo          # (B*Lq, E), sublane concat

    # Residual + LayerNorm1 on the full slab.
    x = q_in + attn
    mu = jnp.mean(x, axis=-1, keepdims=True)
    var = jnp.mean((x - mu) ** 2, axis=-1, keepdims=True)
    h1 = (x - mu) * jax.lax.rsqrt(var + eps) * g1 + b1

    # rFF + residual + LayerNorm2 on the full slab (single (B*Lq,E) matmul).
    ff = jnp.dot(h1, w_ref[4], preferred_element_type=jnp.float32) + bf
    y = h1 + ff
    mu2 = jnp.mean(y, axis=-1, keepdims=True)
    var2 = jnp.mean((y - mu2) ** 2, axis=-1, keepdims=True)
    out_ref[...] = (y - mu2) * jax.lax.rsqrt(var2 + eps) * g2 + b2


def mab_forward(query, key, params, *, heads):
    """params: PyTorch-convention weights; the wrapper repacks them (free)."""
    B, Lq, E = query.shape
    _, Lk, _ = key.shape
    assert E % heads == 0
    f32 = jnp.float32

    # PyTorch stores Linear weights as (out, in); pack their transposes so the
    # kernel only does canonical x @ W matmuls with leading-axis ref indexing.
    w_pack = jnp.stack([params["wq"].T, params["wk"].T, params["wv"].T,
                        params["wo"].T, params["wf"].T]).astype(f32)      # (5,E,E)
    vec_pack = jnp.stack([params["bq"], params["bk"], params["bv"],
                          params["bo"], params["bf"],
                          params["g1"], params["b1"],
                          params["g2"], params["b2"]]).astype(f32)        # (9,E)

    q_flat = query.astype(f32).reshape(B * Lq, E)
    k_flat = key.astype(f32).reshape(B * Lk, E)

    vmem = pl.BlockSpec(memory_space=pltpu.MemorySpace.VMEM)
    out_flat = pl.pallas_call(
        partial(mab_kernel, batch=B, lq=Lq, lk=Lk, heads=heads, eps=1e-5),
        out_shape=jax.ShapeDtypeStruct((B * Lq, E), jnp.float32),
        in_specs=[vmem] * 4,
        out_specs=vmem,
    )(q_flat, k_flat, w_pack, vec_pack)
    return out_flat.reshape(B, Lq, E)


def mab_reference(query, key, params, *, heads):
    """Pure-JAX reference (mirrors nn.MultiheadAttention + residual/LN/Linear/LN)."""
    E = query.shape[-1]
    D = E // heads
    q = query @ params["wq"].T + params["bq"]
    k = key @ params["wk"].T + params["bk"]
    v = key @ params["wv"].T + params["bv"]
    B, Lq, _ = q.shape
    Lk = k.shape[1]
    qh = q.reshape(B, Lq, heads, D).transpose(0, 2, 1, 3)
    kh = k.reshape(B, Lk, heads, D).transpose(0, 2, 1, 3)
    vh = v.reshape(B, Lk, heads, D).transpose(0, 2, 1, 3)
    s = jnp.einsum("bhqd,bhkd->bhqk", qh, kh) / jnp.sqrt(D)
    p = jax.nn.softmax(s, axis=-1)
    o = jnp.einsum("bhqk,bhkd->bhqd", p, vh).transpose(0, 2, 1, 3).reshape(B, Lq, E)
    o = o @ params["wo"].T + params["bo"]

    def ln(x, g, b, eps=1e-5):
        mu = jnp.mean(x, axis=-1, keepdims=True)
        var = jnp.mean((x - mu) ** 2, axis=-1, keepdims=True)
        return (x - mu) * jax.lax.rsqrt(var + eps) * g + b

    h = ln(query + o, params["g1"], params["b1"])
    ff = h @ params["wf"].T + params["bf"]
    return ln(h + ff, params["g2"], params["b2"])


def _xavier_uniform(key, shape):
    fan_out, fan_in = shape
    bound = (6.0 / (fan_in + fan_out)) ** 0.5
    return jax.random.uniform(key, shape, jnp.float32, -bound, bound)


if __name__ == "__main__":
    # query_features = key_features = value_features = 32, heads = 4
    E, HEADS = 32, 4
    B, LQ, LK = 2, 8, 16

    root = jax.random.PRNGKey(0)
    ks = jax.random.split(root, 10)

    query = jax.random.normal(ks[0], (B, LQ, E), jnp.float32)
    key = jax.random.normal(ks[1], (B, LK, E), jnp.float32)

    params = {
        # MultiheadAttention: xavier-uniform proj weights, zero in_proj / out_proj bias
        "wq": _xavier_uniform(ks[2], (E, E)),
        "wk": _xavier_uniform(ks[3], (E, E)),
        "wv": _xavier_uniform(ks[4], (E, E)),
        "bq": jnp.zeros((E,), jnp.float32),
        "bk": jnp.zeros((E,), jnp.float32),
        "bv": jnp.zeros((E,), jnp.float32),
        "wo": _xavier_uniform(ks[5], (E, E)),
        "bo": jnp.zeros((E,), jnp.float32),
        # rFF: xavier-uniform weight, zero bias
        "wf": _xavier_uniform(ks[6], (E, E)),
        "bf": jnp.zeros((E,), jnp.float32),
        # LayerNorms
        "g1": jnp.ones((E,), jnp.float32),
        "b1": jnp.zeros((E,), jnp.float32),
        "g2": jnp.ones((E,), jnp.float32),
        "b2": jnp.zeros((E,), jnp.float32),
    }

    out = mab_forward(query, key, params, heads=HEADS)
    out = jax.block_until_ready(out)

    ref = mab_reference(query, key, params, heads=HEADS)
    assert out.shape == (B, LQ, E), out.shape
    assert jnp.allclose(out, ref, atol=1e-4, rtol=1e-4), float(jnp.max(jnp.abs(out - ref)))

    print("KERNEL_OK")
</pallas_src>

<mosaic_0001>
module attributes {stable_mosaic.version = 11 : i64} {
  func.func @mab_kernel(%arg0: memref<16x32xf32, #tpu.memory_space<vmem>>, %arg1: memref<32x32xf32, #tpu.memory_space<vmem>>, %arg2: memref<5x32x32xf32, #tpu.memory_space<vmem>>, %arg3: memref<9x32xf32, #tpu.memory_space<vmem>>, %arg4: memref<16x32xf32, #tpu.memory_space<vmem>>) attributes {dimension_semantics = [], scalar_prefetch = 0 : i64, scratch_operands = 0 : i64, tpu.core_type = #tpu.core_type<tc>} {
    %c0 = arith.constant 0 : index
    %c0_0 = arith.constant 0 : index
    %0 = vector.load %arg3[%c0, %c0_0] : memref<9x32xf32, #tpu.memory_space<vmem>>, vector<1x32xf32>
    %c1 = arith.constant 1 : index
    %c0_1 = arith.constant 0 : index
    %1 = vector.load %arg3[%c1, %c0_1] : memref<9x32xf32, #tpu.memory_space<vmem>>, vector<1x32xf32>
    %c2 = arith.constant 2 : index
    %c0_2 = arith.constant 0 : index
    %2 = vector.load %arg3[%c2, %c0_2] : memref<9x32xf32, #tpu.memory_space<vmem>>, vector<1x32xf32>
    %c3 = arith.constant 3 : index
    %c0_3 = arith.constant 0 : index
    %3 = vector.load %arg3[%c3, %c0_3] : memref<9x32xf32, #tpu.memory_space<vmem>>, vector<1x32xf32>
    %c4 = arith.constant 4 : index
    %c0_4 = arith.constant 0 : index
    %4 = vector.load %arg3[%c4, %c0_4] : memref<9x32xf32, #tpu.memory_space<vmem>>, vector<1x32xf32>
    %c5 = arith.constant 5 : index
    %c0_5 = arith.constant 0 : index
    %5 = vector.load %arg3[%c5, %c0_5] : memref<9x32xf32, #tpu.memory_space<vmem>>, vector<1x32xf32>
    %c6 = arith.constant 6 : index
    %c0_6 = arith.constant 0 : index
    %6 = vector.load %arg3[%c6, %c0_6] : memref<9x32xf32, #tpu.memory_space<vmem>>, vector<1x32xf32>
    %c7 = arith.constant 7 : index
    %c0_7 = arith.constant 0 : index
    %7 = vector.load %arg3[%c7, %c0_7] : memref<9x32xf32, #tpu.memory_space<vmem>>, vector<1x32xf32>
    %c8 = arith.constant 8 : index
    %c0_8 = arith.constant 0 : index
    %8 = vector.load %arg3[%c8, %c0_8] : memref<9x32xf32, #tpu.memory_space<vmem>>, vector<1x32xf32>
    %c0_9 = arith.constant 0 : index
    %c0_10 = arith.constant 0 : index
    %9 = vector.load %arg0[%c0_9, %c0_10] : memref<16x32xf32, #tpu.memory_space<vmem>>, vector<16x32xf32>
    %c0_11 = arith.constant 0 : index
    %c0_12 = arith.constant 0 : index
    %10 = vector.load %arg1[%c0_11, %c0_12] : memref<32x32xf32, #tpu.memory_space<vmem>>, vector<32x32xf32>
    %c0_13 = arith.constant 0 : index
    %c0_14 = arith.constant 0 : index
    %c0_15 = arith.constant 0 : index
    %11 = vector.load %arg2[%c0_13, %c0_14, %c0_15] : memref<5x32x32xf32, #tpu.memory_space<vmem>>, vector<1x32x32xf32>
    %12 = vector.shape_cast %11 : vector<1x32x32xf32> to vector<32x32xf32>
    %cst = arith.constant dense<0.000000e+00> : vector<16x32xf32>
    %13 = tpu.matmul %9, %12, %cst {dimension_numbers = #tpu.dot_dimension_numbers<[1], [0], [0], [1], [0, 0, 1, 1], [], []>} : vector<16x32xf32>, vector<32x32xf32>, vector<16x32xf32> -> vector<16x32xf32>
    %14 = vector.broadcast %0 : vector<1x32xf32> to vector<16x32xf32>
    %15 = arith.addf %13, %14 : vector<16x32xf32>
    %c1_16 = arith.constant 1 : index
    %c0_17 = arith.constant 0 : index
    %c0_18 = arith.constant 0 : index
    %16 = vector.load %arg2[%c1_16, %c0_17, %c0_18] : memref<5x32x32xf32, #tpu.memory_space<vmem>>, vector<1x32x32xf32>
    %17 = vector.shape_cast %16 : vector<1x32x32xf32> to vector<32x32xf32>
    %cst_19 = arith.constant dense<0.000000e+00> : vector<32x32xf32>
    %18 = tpu.matmul %10, %17, %cst_19 {dimension_numbers = #tpu.dot_dimension_numbers<[1], [0], [0], [1], [0, 0, 1, 1], [], []>} : vector<32x32xf32>, vector<32x32xf32>, vector<32x32xf32> -> vector<32x32xf32>
    %19 = vector.broadcast %1 : vector<1x32xf32> to vector<32x32xf32>
    %20 = arith.addf %18, %19 : vector<32x32xf32>
    %c2_20 = arith.constant 2 : index
    %c0_21 = arith.constant 0 : index
    %c0_22 = arith.constant 0 : index
    %21 = vector.load %arg2[%c2_20, %c0_21, %c0_22] : memref<5x32x32xf32, #tpu.memory_space<vmem>>, vector<1x32x32xf32>
    %22 = vector.shape_cast %21 : vector<1x32x32xf32> to vector<32x32xf32>
    %cst_23 = arith.constant dense<0.000000e+00> : vector<32x32xf32>
    %23 = tpu.matmul %10, %22, %cst_23 {dimension_numbers = #tpu.dot_dimension_numbers<[1], [0], [0], [1], [0, 0, 1, 1], [], []>} : vector<32x32xf32>, vector<32x32xf32>, vector<32x32xf32> -> vector<32x32xf32>
    %24 = vector.broadcast %2 : vector<1x32xf32> to vector<32x32xf32>
    %25 = arith.addf %23, %24 : vector<32x32xf32>
    %c3_24 = arith.constant 3 : index
    %c0_25 = arith.constant 0 : index
    %c0_26 = arith.constant 0 : index
    %26 = vector.load %arg2[%c3_24, %c0_25, %c0_26] : memref<5x32x32xf32, #tpu.memory_space<vmem>>, vector<1x32x32xf32>
    %27 = vector.shape_cast %26 : vector<1x32x32xf32> to vector<32x32xf32>
    %28 = vector.extract_strided_slice %15 {offsets = [0, 0], sizes = [16, 8], strides = [1, 1]} : vector<16x32xf32> to vector<16x8xf32>
    %29 = vector.extract_strided_slice %20 {offsets = [0, 0], sizes = [32, 8], strides = [1, 1]} : vector<32x32xf32> to vector<32x8xf32>
    %30 = vector.extract_strided_slice %25 {offsets = [0, 0], sizes = [32, 8], strides = [1, 1]} : vector<32x32xf32> to vector<32x8xf32>
    %31 = vector.extract_strided_slice %27 {offsets = [0, 0], sizes = [8, 32], strides = [1, 1]} : vector<32x32xf32> to vector<8x32xf32>
    %32 = vector.extract_strided_slice %28 {offsets = [0, 0], sizes = [8, 8], strides = [1, 1]} : vector<16x8xf32> to vector<8x8xf32>
    %33 = vector.extract_strided_slice %29 {offsets = [0, 0], sizes = [16, 8], strides = [1, 1]} : vector<32x8xf32> to vector<16x8xf32>
    %34 = vector.extract_strided_slice %30 {offsets = [0, 0], sizes = [16, 8], strides = [1, 1]} : vector<32x8xf32> to vector<16x8xf32>
    %cst_27 = arith.constant dense<0.000000e+00> : vector<8x16xf32>
    %35 = tpu.matmul %32, %33, %cst_27 {dimension_numbers = #tpu.dot_dimension_numbers<[1], [1], [0], [0], [0, 0, 1, 0], [], []>} : vector<8x8xf32>, vector<16x8xf32>, vector<8x16xf32> -> vector<8x16xf32>
    %cst_28 = arith.constant 0.353553385 : f32
    %36 = vector.broadcast %cst_28 : f32 to vector<8x16xf32>
    %37 = arith.mulf %35, %36 : vector<8x16xf32>
    %cst_29 = arith.constant dense<0xFF800000> : vector<8xf32>
    %38 = vector.multi_reduction <maximumf>, %37, %cst_29 [1] : vector<8x16xf32> to vector<8xf32>
    %39 = vector.shape_cast %38 : vector<8xf32> to vector<8x1xf32>
    %40 = vector.broadcast %39 : vector<8x1xf32> to vector<8x16xf32>
    %41 = arith.subf %37, %40 : vector<8x16xf32>
    %42 = math.exp %41 : vector<8x16xf32>
    %cst_30 = arith.constant dense<0.000000e+00> : vector<8x8xf32>
    %43 = tpu.matmul %42, %34, %cst_30 {dimension_numbers = #tpu.dot_dimension_numbers<[1], [0], [0], [1], [0, 0, 1, 1], [], []>} : vector<8x16xf32>, vector<16x8xf32>, vector<8x8xf32> -> vector<8x8xf32>
    %cst_31 = arith.constant dense<0.000000e+00> : vector<8xf32>
    %44 = vector.multi_reduction <add>, %42, %cst_31 [1] : vector<8x16xf32> to vector<8xf32>
    %45 = vector.shape_cast %44 : vector<8xf32> to vector<8x1xf32>
    %46 = tpu.reciprocal %45 : vector<8x1xf32> -> vector<8x1xf32>
    %47 = vector.broadcast %46 : vector<8x1xf32> to vector<8x8xf32>
    %48 = arith.mulf %43, %47 : vector<8x8xf32>
    %cst_32 = arith.constant dense<0.000000e+00> : vector<8x32xf32>
    %49 = tpu.matmul %48, %31, %cst_32 {dimension_numbers = #tpu.dot_dimension_numbers<[1], [0], [0], [1], [0, 0, 1, 1], [], []>} : vector<8x8xf32>, vector<8x32xf32>, vector<8x32xf32> -> vector<8x32xf32>
    %50 = vector.extract_strided_slice %28 {offsets = [8, 0], sizes = [8, 8], strides = [1, 1]} : vector<16x8xf32> to vector<8x8xf32>
    %51 = vector.extract_strided_slice %29 {offsets = [16, 0], sizes = [16, 8], strides = [1, 1]} : vector<32x8xf32> to vector<16x8xf32>
    %52 = vector.extract_strided_slice %30 {offsets = [16, 0], sizes = [16, 8], strides = [1, 1]} : vector<32x8xf32> to vector<16x8xf32>
    %cst_33 = arith.constant dense<0.000000e+00> : vector<8x16xf32>
    %53 = tpu.matmul %50, %51, %cst_33 {dimension_numbers = #tpu.dot_dimension_numbers<[1], [1], [0], [0], [0, 0, 1, 0], [], []>} : vector<8x8xf32>, vector<16x8xf32>, vector<8x16xf32> -> vector<8x16xf32>
    %cst_34 = arith.constant 0.353553385 : f32
    %54 = vector.broadcast %cst_34 : f32 to vector<8x16xf32>
    %55 = arith.mulf %53, %54 : vector<8x16xf32>
    %cst_35 = arith.constant dense<0xFF800000> : vector<8xf32>
    %56 = vector.multi_reduction <maximumf>, %55, %cst_35 [1] : vector<8x16xf32> to vector<8xf32>
    %57 = vector.shape_cast %56 : vector<8xf32> to vector<8x1xf32>
    %58 = vector.broadcast %57 : vector<8x1xf32> to vector<8x16xf32>
    %59 = arith.subf %55, %58 : vector<8x16xf32>
    %60 = math.exp %59 : vector<8x16xf32>
    %cst_36 = arith.constant dense<0.000000e+00> : vector<8x8xf32>
    %61 = tpu.matmul %60, %52, %cst_36 {dimension_numbers = #tpu.dot_dimension_numbers<[1], [0], [0], [1], [0, 0, 1, 1], [], []>} : vector<8x16xf32>, vector<16x8xf32>, vector<8x8xf32> -> vector<8x8xf32>
    %cst_37 = arith.constant dense<0.000000e+00> : vector<8xf32>
    %62 = vector.multi_reduction <add>, %60, %cst_37 [1] : vector<8x16xf32> to vector<8xf32>
    %63 = vector.shape_cast %62 : vector<8xf32> to vector<8x1xf32>
    %64 = tpu.reciprocal %63 : vector<8x1xf32> -> vector<8x1xf32>
    %65 = vector.broadcast %64 : vector<8x1xf32> to vector<8x8xf32>
    %66 = arith.mulf %61, %65 : vector<8x8xf32>
    %cst_38 = arith.constant dense<0.000000e+00> : vector<8x32xf32>
    %67 = tpu.matmul %66, %31, %cst_38 {dimension_numbers = #tpu.dot_dimension_numbers<[1], [0], [0], [1], [0, 0, 1, 1], [], []>} : vector<8x8xf32>, vector<8x32xf32>, vector<8x32xf32> -> vector<8x32xf32>
    %68 = vector.extract_strided_slice %15 {offsets = [0, 8], sizes = [16, 8], strides = [1, 1]} : vector<16x32xf32> to vector<16x8xf32>
    %69 = vector.extract_strided_slice %20 {offsets = [0, 8], sizes = [32, 8], strides = [1, 1]} : vector<32x32xf32> to vector<32x8xf32>
    %70 = vector.extract_strided_slice %25 {offsets = [0, 8], sizes = [32, 8], strides = [1, 1]} : vector<32x32xf32> to vector<32x8xf32>
    %71 = vector.extract_strided_slice %27 {offsets = [8, 0], sizes = [8, 32], strides = [1, 1]} : vector<32x32xf32> to vector<8x32xf32>
    %72 = vector.extract_strided_slice %68 {offsets = [0, 0], sizes = [8, 8], strides = [1, 1]} : vector<16x8xf32> to vector<8x8xf32>
    %73 = vector.extract_strided_slice %69 {offsets = [0, 0], sizes = [16, 8], strides = [1, 1]} : vector<32x8xf32> to vector<16x8xf32>
    %74 = vector.extract_strided_slice %70 {offsets = [0, 0], sizes = [16, 8], strides = [1, 1]} : vector<32x8xf32> to vector<16x8xf32>
    %cst_39 = arith.constant dense<0.000000e+00> : vector<8x16xf32>
    %75 = tpu.matmul %72, %73, %cst_39 {dimension_numbers = #tpu.dot_dimension_numbers<[1], [1], [0], [0], [0, 0, 1, 0], [], []>} : vector<8x8xf32>, vector<16x8xf32>, vector<8x16xf32> -> vector<8x16xf32>
    %cst_40 = arith.constant 0.353553385 : f32
    %76 = vector.broadcast %cst_40 : f32 to vector<8x16xf32>
    %77 = arith.mulf %75, %76 : vector<8x16xf32>
    %cst_41 = arith.constant dense<0xFF800000> : vector<8xf32>
    %78 = vector.multi_reduction <maximumf>, %77, %cst_41 [1] : vector<8x16xf32> to vector<8xf32>
    %79 = vector.shape_cast %78 : vector<8xf32> to vector<8x1xf32>
    %80 = vector.broadcast %79 : vector<8x1xf32> to vector<8x16xf32>
    %81 = arith.subf %77, %80 : vector<8x16xf32>
    %82 = math.exp %81 : vector<8x16xf32>
    %cst_42 = arith.constant dense<0.000000e+00> : vector<8x8xf32>
    %83 = tpu.matmul %82, %74, %cst_42 {dimension_numbers = #tpu.dot_dimension_numbers<[1], [0], [0], [1], [0, 0, 1, 1], [], []>} : vector<8x16xf32>, vector<16x8xf32>, vector<8x8xf32> -> vector<8x8xf32>
    %cst_43 = arith.constant dense<0.000000e+00> : vector<8xf32>
    %84 = vector.multi_reduction <add>, %82, %cst_43 [1] : vector<8x16xf32> to vector<8xf32>
    %85 = vector.shape_cast %84 : vector<8xf32> to vector<8x1xf32>
    %86 = tpu.reciprocal %85 : vector<8x1xf32> -> vector<8x1xf32>
    %87 = vector.broadcast %86 : vector<8x1xf32> to vector<8x8xf32>
    %88 = arith.mulf %83, %87 : vector<8x8xf32>
    %cst_44 = arith.constant dense<0.000000e+00> : vector<8x32xf32>
    %89 = tpu.matmul %88, %71, %cst_44 {dimension_numbers = #tpu.dot_dimension_numbers<[1], [0], [0], [1], [0, 0, 1, 1], [], []>} : vector<8x8xf32>, vector<8x32xf32>, vector<8x32xf32> -> vector<8x32xf32>
    %90 = arith.addf %49, %89 : vector<8x32xf32>
    %91 = vector.extract_strided_slice %68 {offsets = [8, 0], sizes = [8, 8], strides = [1, 1]} : vector<16x8xf32> to vector<8x8xf32>
    %92 = vector.extract_strided_slice %69 {offsets = [16, 0], sizes = [16, 8], strides = [1, 1]} : vector<32x8xf32> to vector<16x8xf32>
    %93 = vector.extract_strided_slice %70 {offsets = [16, 0], sizes = [16, 8], strides = [1, 1]} : vector<32x8xf32> to vector<16x8xf32>
    %cst_45 = arith.constant dense<0.000000e+00> : vector<8x16xf32>
    %94 = tpu.matmul %91, %92, %cst_45 {dimension_numbers = #tpu.dot_dimension_numbers<[1], [1], [0], [0], [0, 0, 1, 0], [], []>} : vector<8x8xf32>, vector<16x8xf32>, vector<8x16xf32> -> vector<8x16xf32>
    %cst_46 = arith.constant 0.353553385 : f32
    %95 = vector.broadcast %cst_46 : f32 to vector<8x16xf32>
    %96 = arith.mulf %94, %95 : vector<8x16xf32>
    %cst_47 = arith.constant dense<0xFF800000> : vector<8xf32>
    %97 = vector.multi_reduction <maximumf>, %96, %cst_47 [1] : vector<8x16xf32> to vector<8xf32>
    %98 = vector.shape_cast %97 : vector<8xf32> to vector<8x1xf32>
    %99 = vector.broadcast %98 : vector<8x1xf32> to vector<8x16xf32>
    %100 = arith.subf %96, %99 : vector<8x16xf32>
    %101 = math.exp %100 : vector<8x16xf32>
    %cst_48 = arith.constant dense<0.000000e+00> : vector<8x8xf32>
    %102 = tpu.matmul %101, %93, %cst_48 {dimension_numbers = #tpu.dot_dimension_numbers<[1], [0], [0], [1], [0, 0, 1, 1], [], []>} : vector<8x16xf32>, vector<16x8xf32>, vector<8x8xf32> -> vector<8x8xf32>
    %cst_49 = arith.constant dense<0.000000e+00> : vector<8xf32>
    %103 = vector.multi_reduction <add>, %101, %cst_49 [1] : vector<8x16xf32> to vector<8xf32>
    %104 = vector.shape_cast %103 : vector<8xf32> to vector<8x1xf32>
    %105 = tpu.reciprocal %104 : vector<8x1xf32> -> vector<8x1xf32>
    %106 = vector.broadcast %105 : vector<8x1xf32> to vector<8x8xf32>
    %107 = arith.mulf %102, %106 : vector<8x8xf32>
    %cst_50 = arith.constant dense<0.000000e+00> : vector<8x32xf32>
    %108 = tpu.matmul %107, %71, %cst_50 {dimension_numbers = #tpu.dot_dimension_numbers<[1], [0], [0], [1], [0, 0, 1, 1], [], []>} : vector<8x8xf32>, vector<8x32xf32>, vector<8x32xf32> -> vector<8x32xf32>
    %109 = arith.addf %67, %108 : vector<8x32xf32>
    %110 = vector.extract_strided_slice %15 {offsets = [0, 16], sizes = [16, 8], strides = [1, 1]} : vector<16x32xf32> to vector<16x8xf32>
    %111 = vector.extract_strided_slice %20 {offsets = [0, 16], sizes = [32, 8], strides = [1, 1]} : vector<32x32xf32> to vector<32x8xf32>
    %112 = vector.extract_strided_slice %25 {offsets = [0, 16], sizes = [32, 8], strides = [1, 1]} : vector<32x32xf32> to vector<32x8xf32>
    %113 = vector.extract_strided_slice %27 {offsets = [16, 0], sizes = [8, 32], strides = [1, 1]} : vector<32x32xf32> to vector<8x32xf32>
    %114 = vector.extract_strided_slice %110 {offsets = [0, 0], sizes = [8, 8], strides = [1, 1]} : vector<16x8xf32> to vector<8x8xf32>
    %115 = vector.extract_strided_slice %111 {offsets = [0, 0], sizes = [16, 8], strides = [1, 1]} : vector<32x8xf32> to vector<16x8xf32>
    %116 = vector.extract_strided_slice %112 {offsets = [0, 0], sizes = [16, 8], strides = [1, 1]} : vector<32x8xf32> to vector<16x8xf32>
    %cst_51 = arith.constant dense<0.000000e+00> : vector<8x16xf32>
    %117 = tpu.matmul %114, %115, %cst_51 {dimension_numbers = #tpu.dot_dimension_numbers<[1], [1], [0], [0], [0, 0, 1, 0], [], []>} : vector<8x8xf32>, vector<16x8xf32>, vector<8x16xf32> -> vector<8x16xf32>
    %cst_52 = arith.constant 0.353553385 : f32
    %118 = vector.broadcast %cst_52 : f32 to vector<8x16xf32>
    %119 = arith.mulf %117, %118 : vector<8x16xf32>
    %cst_53 = arith.constant dense<0xFF800000> : vector<8xf32>
    %120 = vector.multi_reduction <maximumf>, %119, %cst_53 [1] : vector<8x16xf32> to vector<8xf32>
    %121 = vector.shape_cast %120 : vector<8xf32> to vector<8x1xf32>
    %122 = vector.broadcast %121 : vector<8x1xf32> to vector<8x16xf32>
    %123 = arith.subf %119, %122 : vector<8x16xf32>
    %124 = math.exp %123 : vector<8x16xf32>
    %cst_54 = arith.constant dense<0.000000e+00> : vector<8x8xf32>
    %125 = tpu.matmul %124, %116, %cst_54 {dimension_numbers = #tpu.dot_dimension_numbers<[1], [0], [0], [1], [0, 0, 1, 1], [], []>} : vector<8x16xf32>, vector<16x8xf32>, vector<8x8xf32> -> vector<8x8xf32>
    %cst_55 = arith.constant dense<0.000000e+00> : vector<8xf32>
    %126 = vector.multi_reduction <add>, %124, %cst_55 [1] : vector<8x16xf32> to vector<8xf32>
    %127 = vector.shape_cast %126 : vector<8xf32> to vector<8x1xf32>
    %128 = tpu.reciprocal %127 : vector<8x1xf32> -> vector<8x1xf32>
    %129 = vector.broadcast %128 : vector<8x1xf32> to vector<8x8xf32>
    %130 = arith.mulf %125, %129 : vector<8x8xf32>
    %cst_56 = arith.constant dense<0.000000e+00> : vector<8x32xf32>
    %131 = tpu.matmul %130, %113, %cst_56 {dimension_numbers = #tpu.dot_dimension_numbers<[1], [0], [0], [1], [0, 0, 1, 1], [], []>} : vector<8x8xf32>, vector<8x32xf32>, vector<8x32xf32> -> vector<8x32xf32>
    %132 = arith.addf %90, %131 : vector<8x32xf32>
    %133 = vector.extract_strided_slice %110 {offsets = [8, 0], sizes = [8, 8], strides = [1, 1]} : vector<16x8xf32> to vector<8x8xf32>
    %134 = vector.extract_strided_slice %111 {offsets = [16, 0], sizes = [16, 8], strides = [1, 1]} : vector<32x8xf32> to vector<16x8xf32>
    %135 = vector.extract_strided_slice %112 {offsets = [16, 0], sizes = [16, 8], strides = [1, 1]} : vector<32x8xf32> to vector<16x8xf32>
    %cst_57 = arith.constant dense<0.000000e+00> : vector<8x16xf32>
    %136 = tpu.matmul %133, %134, %cst_57 {dimension_numbers = #tpu.dot_dimension_numbers<[1], [1], [0], [0], [0, 0, 1, 0], [], []>} : vector<8x8xf32>, vector<16x8xf32>, vector<8x16xf32> -> vector<8x16xf32>
    %cst_58 = arith.constant 0.353553385 : f32
    %137 = vector.broadcast %cst_58 : f32 to vector<8x16xf32>
    %138 = arith.mulf %136, %137 : vector<8x16xf32>
    %cst_59 = arith.constant dense<0xFF800000> : vector<8xf32>
    %139 = vector.multi_reduction <maximumf>, %138, %cst_59 [1] : vector<8x16xf32> to vector<8xf32>
    %140 = vector.shape_cast %139 : vector<8xf32> to vector<8x1xf32>
    %141 = vector.broadcast %140 : vector<8x1xf32> to vector<8x16xf32>
    %142 = arith.subf %138, %141 : vector<8x16xf32>
    %143 = math.exp %142 : vector<8x16xf32>
    %cst_60 = arith.constant dense<0.000000e+00> : vector<8x8xf32>
    %144 = tpu.matmul %143, %135, %cst_60 {dimension_numbers = #tpu.dot_dimension_numbers<[1], [0], [0], [1], [0, 0, 1, 1], [], []>} : vector<8x16xf32>, vector<16x8xf32>, vector<8x8xf32> -> vector<8x8xf32>
    %cst_61 = arith.constant dense<0.000000e+00> : vector<8xf32>
    %145 = vector.multi_reduction <add>, %143, %cst_61 [1] : vector<8x16xf32> to vector<8xf32>
    %146 = vector.shape_cast %145 : vector<8xf32> to vector<8x1xf32>
    %147 = tpu.reciprocal %146 : vector<8x1xf32> -> vector<8x1xf32>
    %148 = vector.broadcast %147 : vector<8x1xf32> to vector<8x8xf32>
    %149 = arith.mulf %144, %148 : vector<8x8xf32>
    %cst_62 = arith.constant dense<0.000000e+00> : vector<8x32xf32>
    %150 = tpu.matmul %149, %113, %cst_62 {dimension_numbers = #tpu.dot_dimension_numbers<[1], [0], [0], [1], [0, 0, 1, 1], [], []>} : vector<8x8xf32>, vector<8x32xf32>, vector<8x32xf32> -> vector<8x32xf32>
    %151 = arith.addf %109, %150 : vector<8x32xf32>
    %152 = vector.extract_strided_slice %15 {offsets = [0, 24], sizes = [16, 8], strides = [1, 1]} : vector<16x32xf32> to vector<16x8xf32>
    %153 = vector.extract_strided_slice %20 {offsets = [0, 24], sizes = [32, 8], strides = [1, 1]} : vector<32x32xf32> to vector<32x8xf32>
    %154 = vector.extract_strided_slice %25 {offsets = [0, 24], sizes = [32, 8], strides = [1, 1]} : vector<32x32xf32> to vector<32x8xf32>
    %155 = vector.extract_strided_slice %27 {offsets = [24, 0], sizes = [8, 32], strides = [1, 1]} : vector<32x32xf32> to vector<8x32xf32>
    %156 = vector.extract_strided_slice %152 {offsets = [0, 0], sizes = [8, 8], strides = [1, 1]} : vector<16x8xf32> to vector<8x8xf32>
    %157 = vector.extract_strided_slice %153 {offsets = [0, 0], sizes = [16, 8], strides = [1, 1]} : vector<32x8xf32> to vector<16x8xf32>
    %158 = vector.extract_strided_slice %154 {offsets = [0, 0], sizes = [16, 8], strides = [1, 1]} : vector<32x8xf32> to vector<16x8xf32>
    %cst_63 = arith.constant dense<0.000000e+00> : vector<8x16xf32>
    %159 = tpu.matmul %156, %157, %cst_63 {dimension_numbers = #tpu.dot_dimension_numbers<[1], [1], [0], [0], [0, 0, 1, 0], [], []>} : vector<8x8xf32>, vector<16x8xf32>, vector<8x16xf32> -> vector<8x16xf32>
    %cst_64 = arith.constant 0.353553385 : f32
    %160 = vector.broadcast %cst_64 : f32 to vector<8x16xf32>
    %161 = arith.mulf %159, %160 : vector<8x16xf32>
    %cst_65 = arith.constant dense<0xFF800000> : vector<8xf32>
    %162 = vector.multi_reduction <maximumf>, %161, %cst_65 [1] : vector<8x16xf32> to vector<8xf32>
    %163 = vector.shape_cast %162 : vector<8xf32> to vector<8x1xf32>
    %164 = vector.broadcast %163 : vector<8x1xf32> to vector<8x16xf32>
    %165 = arith.subf %161, %164 : vector<8x16xf32>
    %166 = math.exp %165 : vector<8x16xf32>
    %cst_66 = arith.constant dense<0.000000e+00> : vector<8x8xf32>
    %167 = tpu.matmul %166, %158, %cst_66 {dimension_numbers = #tpu.dot_dimension_numbers<[1], [0], [0], [1], [0, 0, 1, 1], [], []>} : vector<8x16xf32>, vector<16x8xf32>, vector<8x8xf32> -> vector<8x8xf32>
    %cst_67 = arith.constant dense<0.000000e+00> : vector<8xf32>
    %168 = vector.multi_reduction <add>, %166, %cst_67 [1] : vector<8x16xf32> to vector<8xf32>
    %169 = vector.shape_cast %168 : vector<8xf32> to vector<8x1xf32>
    %170 = tpu.reciprocal %169 : vector<8x1xf32> -> vector<8x1xf32>
    %171 = vector.broadcast %170 : vector<8x1xf32> to vector<8x8xf32>
    %172 = arith.mulf %167, %171 : vector<8x8xf32>
    %cst_68 = arith.constant dense<0.000000e+00> : vector<8x32xf32>
    %173 = tpu.matmul %172, %155, %cst_68 {dimension_numbers = #tpu.dot_dimension_numbers<[1], [0], [0], [1], [0, 0, 1, 1], [], []>} : vector<8x8xf32>, vector<8x32xf32>, vector<8x32xf32> -> vector<8x32xf32>
    %174 = arith.addf %132, %173 : vector<8x32xf32>
    %175 = vector.extract_strided_slice %152 {offsets = [8, 0], sizes = [8, 8], strides = [1, 1]} : vector<16x8xf32> to vector<8x8xf32>
    %176 = vector.extract_strided_slice %153 {offsets = [16, 0], sizes = [16, 8], strides = [1, 1]} : vector<32x8xf32> to vector<16x8xf32>
    %177 = vector.extract_strided_slice %154 {offsets = [16, 0], sizes = [16, 8], strides = [1, 1]} : vector<32x8xf32> to vector<16x8xf32>
    %cst_69 = arith.constant dense<0.000000e+00> : vector<8x16xf32>
    %178 = tpu.matmul %175, %176, %cst_69 {dimension_numbers = #tpu.dot_dimension_numbers<[1], [1], [0], [0], [0, 0, 1, 0], [], []>} : vector<8x8xf32>, vector<16x8xf32>, vector<8x16xf32> -> vector<8x16xf32>
    %cst_70 = arith.constant 0.353553385 : f32
    %179 = vector.broadcast %cst_70 : f32 to vector<8x16xf32>
    %180 = arith.mulf %178, %179 : vector<8x16xf32>
    %cst_71 = arith.constant dense<0xFF800000> : vector<8xf32>
    %181 = vector.multi_reduction <maximumf>, %180, %cst_71 [1] : vector<8x16xf32> to vector<8xf32>
    %182 = vector.shape_cast %181 : vector<8xf32> to vector<8x1xf32>
    %183 = vector.broadcast %182 : vector<8x1xf32> to vector<8x16xf32>
    %184 = arith.subf %180, %183 : vector<8x16xf32>
    %185 = math.exp %184 : vector<8x16xf32>
    %cst_72 = arith.constant dense<0.000000e+00> : vector<8x8xf32>
    %186 = tpu.matmul %185, %177, %cst_72 {dimension_numbers = #tpu.dot_dimension_numbers<[1], [0], [0], [1], [0, 0, 1, 1], [], []>} : vector<8x16xf32>, vector<16x8xf32>, vector<8x8xf32> -> vector<8x8xf32>
    %cst_73 = arith.constant dense<0.000000e+00> : vector<8xf32>
    %187 = vector.multi_reduction <add>, %185, %cst_73 [1] : vector<8x16xf32> to vector<8xf32>
    %188 = vector.shape_cast %187 : vector<8xf32> to vector<8x1xf32>
    %189 = tpu.reciprocal %188 : vector<8x1xf32> -> vector<8x1xf32>
    %190 = vector.broadcast %189 : vector<8x1xf32> to vector<8x8xf32>
    %191 = arith.mulf %186, %190 : vector<8x8xf32>
    %cst_74 = arith.constant dense<0.000000e+00> : vector<8x32xf32>
    %192 = tpu.matmul %191, %155, %cst_74 {dimension_numbers = #tpu.dot_dimension_numbers<[1], [0], [0], [1], [0, 0, 1, 1], [], []>} : vector<8x8xf32>, vector<8x32xf32>, vector<8x32xf32> -> vector<8x32xf32>
    %193 = arith.addf %151, %192 : vector<8x32xf32>
    %194 = tpu.concatenate %174, %193 in 0 : vector<8x32xf32>, vector<8x32xf32> -> vector<16x32xf32>
    %195 = vector.broadcast %3 : vector<1x32xf32> to vector<16x32xf32>
    %196 = arith.addf %194, %195 : vector<16x32xf32>
    %197 = arith.addf %9, %196 : vector<16x32xf32>
    %cst_75 = arith.constant dense<0.000000e+00> : vector<16xf32>
    %198 = vector.multi_reduction <add>, %197, %cst_75 [1] : vector<16x32xf32> to vector<16xf32>
    %199 = vector.shape_cast %198 : vector<16xf32> to vector<16x1xf32>
    %cst_76 = arith.constant 3.200000e+01 : f32
    %200 = vector.broadcast %cst_76 : f32 to vector<16x1xf32>
    %201 = arith.divf %199, %200 : vector<16x1xf32>
    %202 = vector.broadcast %201 : vector<16x1xf32> to vector<16x32xf32>
    %203 = arith.subf %197, %202 : vector<16x32xf32>
    %204 = arith.mulf %203, %203 : vector<16x32xf32>
    %cst_77 = arith.constant dense<0.000000e+00> : vector<16xf32>
    %205 = vector.multi_reduction <add>, %204, %cst_77 [1] : vector<16x32xf32> to vector<16xf32>
    %206 = vector.shape_cast %205 : vector<16xf32> to vector<16x1xf32>
    %cst_78 = arith.constant 3.200000e+01 : f32
    %207 = vector.broadcast %cst_78 : f32 to vector<16x1xf32>
    %208 = arith.divf %206, %207 : vector<16x1xf32>
    %209 = vector.broadcast %201 : vector<16x1xf32> to vector<16x32xf32>
    %210 = arith.subf %197, %209 : vector<16x32xf32>
    %cst_79 = arith.constant 9.99999974E-6 : f32
    %211 = vector.broadcast %cst_79 : f32 to vector<16x1xf32>
    %212 = arith.addf %208, %211 : vector<16x1xf32>
    %213 = math.rsqrt %212 : vector<16x1xf32>
    %214 = vector.broadcast %213 : vector<16x1xf32> to vector<16x32xf32>
    %215 = arith.mulf %210, %214 : vector<16x32xf32>
    %216 = vector.broadcast %5 : vector<1x32xf32> to vector<16x32xf32>
    %217 = arith.mulf %215, %216 : vector<16x32xf32>
    %218 = vector.broadcast %6 : vector<1x32xf32> to vector<16x32xf32>
    %219 = arith.addf %217, %218 : vector<16x32xf32>
    %c4_80 = arith.constant 4 : index
    %c0_81 = arith.constant 0 : index
    %c0_82 = arith.constant 0 : index
    %220 = vector.load %arg2[%c4_80, %c0_81, %c0_82] : memref<5x32x32xf32, #tpu.memory_space<vmem>>, vector<1x32x32xf32>
    %221 = vector.shape_cast %220 : vector<1x32x32xf32> to vector<32x32xf32>
    %cst_83 = arith.constant dense<0.000000e+00> : vector<16x32xf32>
    %222 = tpu.matmul %219, %221, %cst_83 {dimension_numbers = #tpu.dot_dimension_numbers<[1], [0], [0], [1], [0, 0, 1, 1], [], []>} : vector<16x32xf32>, vector<32x32xf32>, vector<16x32xf32> -> vector<16x32xf32>
    %223 = vector.broadcast %4 : vector<1x32xf32> to vector<16x32xf32>
    %224 = arith.addf %222, %223 : vector<16x32xf32>
    %225 = arith.addf %219, %224 : vector<16x32xf32>
    %cst_84 = arith.constant dense<0.000000e+00> : vector<16xf32>
    %226 = vector.multi_reduction <add>, %225, %cst_84 [1] : vector<16x32xf32> to vector<16xf32>
    %227 = vector.shape_cast %226 : vector<16xf32> to vector<16x1xf32>
    %cst_85 = arith.constant 3.200000e+01 : f32
    %228 = vector.broadcast %cst_85 : f32 to vector<16x1xf32>
    %229 = arith.divf %227, %228 : vector<16x1xf32>
    %230 = vector.broadcast %229 : vector<16x1xf32> to vector<16x32xf32>
    %231 = arith.subf %225, %230 : vector<16x32xf32>
    %232 = arith.mulf %231, %231 : vector<16x32xf32>
    %cst_86 = arith.constant dense<0.000000e+00> : vector<16xf32>
    %233 = vector.multi_reduction <add>, %232, %cst_86 [1] : vector<16x32xf32> to vector<16xf32>
    %234 = vector.shape_cast %233 : vector<16xf32> to vector<16x1xf32>
    %cst_87 = arith.constant 3.200000e+01 : f32
    %235 = vector.broadcast %cst_87 : f32 to vector<16x1xf32>
    %236 = arith.divf %234, %235 : vector<16x1xf32>
    %237 = vector.broadcast %229 : vector<16x1xf32> to vector<16x32xf32>
    %238 = arith.subf %225, %237 : vector<16x32xf32>
    %cst_88 = arith.constant 9.99999974E-6 : f32
    %239 = vector.broadcast %cst_88 : f32 to vector<16x1xf32>
    %240 = arith.addf %236, %239 : vector<16x1xf32>
    %241 = math.rsqrt %240 : vector<16x1xf32>
    %242 = vector.broadcast %241 : vector<16x1xf32> to vector<16x32xf32>
    %243 = arith.mulf %238, %242 : vector<16x32xf32>
    %244 = vector.broadcast %7 : vector<1x32xf32> to vector<16x32xf32>
    %245 = arith.mulf %243, %244 : vector<16x32xf32>
    %246 = vector.broadcast %8 : vector<1x32xf32> to vector<16x32xf32>
    %247 = arith.addf %245, %246 : vector<16x32xf32>
    %c0_89 = arith.constant 0 : index
    %c0_90 = arith.constant 0 : index
    %248 = vector.load %arg4[%c0_89, %c0_90] : memref<16x32xf32, #tpu.memory_space<vmem>>, vector<16x32xf32>
    tpu.vector_store %arg4[%c0_89, %c0_90], %247 {strides = array<i32>} : memref<16x32xf32, #tpu.memory_space<vmem>>, vector<16x32xf32>,
    return
  }
}

</mosaic_0001>

<llo_original>
// kernel: tpu_custom_call.1
$region0: #{tpu_custom_call.1}
  #allocation0 [shape = 'u32[]', space=smem, size = 0x4, offset = 0x4, fixed_abs, tag = 'smem constant byte address 0x4 - core index']
  #allocation1 [shape = 'u32[144,128]{1,0:T(1,128)}', space=vmem, size = 0x12000, scoped, tag = 'internal scratch']
  %s0 = inlined_call_operand.hbm [shape: f32[16,32], index: 0, kind: input, shape index: {}]
  %s1 = inlined_call_operand.hbm [shape: f32[32,32], index: 1, kind: input, shape index: {}]
  %s2 = inlined_call_operand.hbm [shape: f32[5,32,32], index: 2, kind: input, shape index: {}]
  %s3 = inlined_call_operand.hbm [shape: f32[9,32], index: 3, kind: input, shape index: {}]
  %s4 = inlined_call_operand.hbm [shape: f32[16,32], index: 4, kind: output, shape index: {}]
  %s5 = sld [smem:[#allocation0]]
  $region42: #{tpu_custom_call.1} parent=0
    _
  %s7 = ssub.s32 1, %s5
  %s8 = scalar_select 0, %s7, %s5
  $region1: #{tpu_custom_call.1} parent=0
    #allocation2 [shape = 'u8[8192]{0}', space=vmem, size = 0x2000, scoped, tag = 'input window, operand 0, single buffered']
    #allocation3 [shape = 's32[1]{0}', space=sflag, size = 0x4, scoped, tag = 'scoped memory for tpu_custom_call.1']
    #allocation4 [shape = 's32[1]{0}', space=sflag, size = 0x4, scoped, tag = 'scoped memory for tpu_custom_call.1']
    #allocation5 [shape = 'u8[16384]{0}', space=vmem, size = 0x4000, scoped, tag = 'input window, operand 1, single buffered']
    #allocation6 [shape = 's32[1]{0}', space=sflag, size = 0x4, scoped, tag = 'scoped memory for tpu_custom_call.1']
    #allocation7 [shape = 'u8[81920]{0}', space=vmem, size = 0x14000, scoped, tag = 'input window, operand 2, single buffered']
    #allocation8 [shape = 'u8[8192]{0}', space=vmem, size = 0x2000, scoped, tag = 'input window, operand 3, single buffered']
    #allocation9 [shape = 's32[1]{0}', space=sflag, size = 0x4, scoped, tag = 'scoped memory for tpu_custom_call.1']
    #allocation10 [shape = 'u8[8192]{0}', space=vmem, size = 0x2000, scoped, tag = 'output window, operand 0, single buffered']
    %9 = vsyncpa [#allocation3], 0
    %10 = vsyncpa [#allocation6], 0
    %11 = vsyncpa [#allocation9], 0
    %12 = vsyncpa [#allocation4], 0
    // Predicated region
    $region2: #{tpu_custom_call.1} parent=1 // pred_check
      _
    $region3: #{tpu_custom_call.1} parent=1 // pred_check_branch
      %14 = sbr.rel (0) target = $region5
    $region4: #{tpu_custom_call.1} parent=1 // pred_region
      %s16 = ssub.s32 256, 256
      %17 = vsyncadd [#allocation3], %s16
      %s18 = sshll.u32 [#allocation2], 4
      %s19 = int_to_ptr.vmem [resolvable:$true] %s18
      %24 = dma.hbm_to_vmem [thread:$0]  %s0, 256, %s19, [#allocation3], 128, 128, 8
    $region5: #{tpu_custom_call.1} parent=1 // pred_fallthru
      _
    // Predicated region
    $region6: #{tpu_custom_call.1} parent=1 // pred_check
      _
    $region7: #{tpu_custom_call.1} parent=1 // pred_check_branch
      %26 = sbr.rel (0) target = $region9
    $region8: #{tpu_custom_call.1} parent=1 // pred_region
      %s28 = ssub.s32 512, 512
      %29 = vsyncadd [#allocation6], %s28
      %s30 = sshll.u32 [#allocation5], 4
      %s31 = int_to_ptr.vmem [resolvable:$true] %s30
      %36 = dma.hbm_to_vmem [thread:$0]  %s1, 512, %s31, [#allocation6], 128, 128, 8
    $region9: #{tpu_custom_call.1} parent=1 // pred_fallthru
      _
    // Predicated region
    $region10: #{tpu_custom_call.1} parent=1 // pred_check
      _
    $region11: #{tpu_custom_call.1} parent=1 // pred_check_branch
      %38 = sbr.rel (0) target = $region13
    $region12: #{tpu_custom_call.1} parent=1 // pred_region
      %s40 = ssub.s32 2560, 2560
      %41 = vsyncadd [#allocation6], %s40
      %s42 = sshll.u32 [#allocation7], 4
      %s43 = int_to_ptr.vmem [resolvable:$true] %s42
      %48 = dma.hbm_to_vmem [thread:$0]  %s2, 2560, %s43, [#allocation6], 128, 128, 8
    $region13: #{tpu_custom_call.1} parent=1 // pred_fallthru
      _
    // Predicated region
    $region14: #{tpu_custom_call.1} parent=1 // pred_check
      _
    $region15: #{tpu_custom_call.1} parent=1 // pred_check_branch
      %50 = sbr.rel (0) target = $region17
    $region16: #{tpu_custom_call.1} parent=1 // pred_region
      %s52 = ssub.s32 256, 256
      %53 = vsyncadd [#allocation9], %s52
      %s54 = sshll.u32 [#allocation8], 4
      %s55 = int_to_ptr.vmem [resolvable:$true] %s54
      %60 = dma.hbm_to_vmem [thread:$0]  %s3, 256, %s55, [#allocation9], 128, 128, 8
    $region17: #{tpu_custom_call.1} parent=1 // pred_fallthru
      _
    // Predicated region
    $region18: #{tpu_custom_call.1} parent=1 // pred_check
      _
    $region19: #{tpu_custom_call.1} parent=1 // pred_check_branch
      %62 = sbr.rel (0) target = $region21
    $region20: #{tpu_custom_call.1} parent=1 // pred_region
      %63 = dma.done [#allocation3], 256
    $region21: #{tpu_custom_call.1} parent=1 // pred_fallthru
      _
    // Predicated region
    $region22: #{tpu_custom_call.1} parent=1 // pred_check
      _
    $region23: #{tpu_custom_call.1} parent=1 // pred_check_branch
      %65 = sbr.rel (0) target = $region25
    $region24: #{tpu_custom_call.1} parent=1 // pred_region
      %66 = dma.done [#allocation6], 512
    $region25: #{tpu_custom_call.1} parent=1 // pred_fallthru
      _
    // Predicated region
    $region26: #{tpu_custom_call.1} parent=1 // pred_check
      _
    $region27: #{tpu_custom_call.1} parent=1 // pred_check_branch
      %68 = sbr.rel (0) target = $region29
    $region28: #{tpu_custom_call.1} parent=1 // pred_region
      %69 = dma.done [#allocation6], 2560
    $region29: #{tpu_custom_call.1} parent=1 // pred_fallthru
      _
    // Predicated region
    $region30: #{tpu_custom_call.1} parent=1 // pred_check
      _
    $region31: #{tpu_custom_call.1} parent=1 // pred_check_branch
      %71 = sbr.rel (0) target = $region33
    $region32: #{tpu_custom_call.1} parent=1 // pred_region
      %72 = dma.done [#allocation9], 256
    $region33: #{tpu_custom_call.1} parent=1 // pred_fallthru
      _
    %v73 = vld [vmem:[#allocation8] sm:$0x1]
    %v74 = vld [vmem:[#allocation8 + $0x1] sm:$0x1]
    %v75 = vld [vmem:[#allocation8 + $0x2] sm:$0x1]
    %v76 = vld [vmem:[#allocation8 + $0x3] sm:$0x1]
    %v77 = vld [vmem:[#allocation8 + $0x4] sm:$0x1]
    %v78 = vld [vmem:[#allocation8 + $0x5] sm:$0x1]
    %v79 = vld [vmem:[#allocation8 + $0x6] sm:$0x1]
    %v80 = vld [vmem:[#allocation8 + $0x7] sm:$0x1]
    %v81 = vld [vmem:[#allocation8 + $0x8] sm:$0x1]
    %v82 = vld [vmem:[#allocation2] sm:$0xff]
    %v83 = vld [vmem:[#allocation2 + $0x8] sm:$0xff]
    %v84 = vld [vmem:[#allocation5] sm:$0xff]
    %v85 = vld [vmem:[#allocation5 + $0x8] sm:$0xff]
    %v86 = vld [vmem:[#allocation5 + $0x10] sm:$0xff]
    %v87 = vld [vmem:[#allocation5 + $0x18] sm:$0xff]
    %v88 = vld [vmem:[#allocation7] sm:$0xff]
    %v89 = vld [vmem:[#allocation7 + $0x8] sm:$0xff]
    %v90 = vld [vmem:[#allocation7 + $0x10] sm:$0xff]
    %v91 = vld [vmem:[#allocation7 + $0x18] sm:$0xff]
    %v92 = vlaneseq
    %v93 = vshrl.u32 %v92, 7
    %v94 = vsub.s32 0, %v93
    %v95 = vrot.slane %v73, %v94
    %vm96 = vcmask 261120
    %v98 = vsel %vm96, %v82, 0
    %v101 = vsel %vm96, %v83, 0
    %103 = vmatprep.subr.mxu0 0.0
    %104 = vmatpush1.msra.mxu0 %v88
    %105 = vmatprep.subr.mxu0 0.0
    %106 = vmatpush1.msra.mxu0 %v89
    %107 = vmatprep.subr.mxu0 0.0
    %108 = vmatpush1.msra.mxu0 %v90
    %109 = vmatprep.subr.mxu0 0.0
    %110 = vmatpush1.msra.mxu0 %v91
    %111 = vmatprep.subr.mxu0 0.0
    %112 = vmatpush1.msra.mxu0 0.0
    %113 = vmatprep.subr.mxu0 0.0
    %114 = vmatpush1.msra.mxu0 0.0
    %115 = vmatprep.subr.mxu0 0.0
    %116 = vmatpush1.msra.mxu0 0.0
    %117 = vmatprep.subr.mxu0 0.0
    %118 = vmatpush1.msra.mxu0 0.0
    %119 = vmatprep.subr.mxu0 0.0
    %120 = vmatpush1.msra.mxu0 0.0
    %121 = vmatprep.subr.mxu0 0.0
    %122 = vmatpush1.msra.mxu0 0.0
    %123 = vmatprep.subr.mxu0 0.0
    %124 = vmatpush1.msra.mxu0 0.0
    %125 = vmatprep.subr.mxu0 0.0
    %126 = vmatpush1.msra.mxu0 0.0
    %127 = vmatprep.subr.mxu0 0.0
    %128 = vmatpush1.msra.mxu0 0.0
    %129 = vmatprep.subr.mxu0 0.0
    %130 = vmatpush1.msra.mxu0 0.0
    %131 = vmatprep.subr.mxu0 0.0
    %132 = vmatpush1.msra.mxu0 0.0
    %133 = vmatprep.subr.mxu0 0.0
    %134 = vmatpush1.msra.mxu0 0.0
    %135 = vmatprep.subr.mxu0 0.0
    %136 = vmatpush1.msra.mxu0 0.0
    %137 = vmatprep.subr.mxu0 0.0
    %138 = vmatpush1.msra.mxu0 0.0
    %139 = vmatprep.subr.mxu0 0.0
    %140 = vmatpush1.msra.mxu0 0.0
    %141 = vmatprep.subr.mxu0 0.0
    %142 = vmatpush1.msra.mxu0 0.0
    %143 = vmatprep.subr.mxu0 0.0
    %144 = vmatpush1.msra.mxu0 0.0
    %145 = vmatprep.subr.mxu0 0.0
    %146 = vmatpush1.msra.mxu0 0.0
    %147 = vmatprep.subr.mxu0 0.0
    %148 = vmatpush1.msra.mxu0 0.0
    %149 = vmatprep.subr.mxu0 0.0
    %150 = vmatpush1.msra.mxu0 0.0
    %151 = vmatprep.subr.mxu0 0.0
    %152 = vmatpush1.msra.mxu0 0.0
    %153 = vmatprep.subr.mxu0 0.0
    %154 = vmatpush1.msra.mxu0 0.0
    %155 = vmatprep.subr.mxu0 0.0
    %156 = vmatpush1.msra.mxu0 0.0
    %157 = vmatprep.subr.mxu0 0.0
    %158 = vmatpush1.msra.mxu0 0.0
    %159 = vmatprep.subr.mxu0 0.0
    %160 = vmatpush1.msra.mxu0 0.0
    %161 = vmatprep.subr.mxu0 0.0
    %162 = vmatpush1.msra.mxu0 0.0
    %163 = vmatprep.subr.mxu0 0.0
    %164 = vmatpush1.msra.mxu0 0.0
    %165 = vmatprep.subr.mxu0 0.0
    %166 = vmatpush1.msra.mxu0 0.0
    %167 = vmatprep.mubr.f32.mxu0 0.0
    %168 = vmatmul.mubr.f32.gmra.mrb[0].mxu0 %v98
    %v169 = vpop.f32.mrb[0].mxu0
    %v170 = vadd.f32 %v95, %v169
    %v171 = vpop.f32.mrb[0].mxu0
    %172 = vmatprep.mubr.f32.mxu0 0.0
    %173 = vmatmul.mubr.f32.gmra.mrb[0].mxu0 %v101
    %v174 = vpop.f32.mrb[0].mxu0
    %v175 = vadd.f32 %v95, %v174
    %v176 = vpop.f32.mrb[0].mxu0
    %177 = vdwg.mxu0
    %s178 = scalar_lea.vmem [#allocation7], 32
    %v179 = vld [vmem:[%s178] sm:$0xff]
    %v180 = vld [vmem:[%s178 + $0x8] sm:$0xff]
    %v181 = vld [vmem:[%s178 + $0x10] sm:$0xff]
    %v182 = vld [vmem:[%s178 + $0x18] sm:$0xff]
    %v183 = vlaneseq
    %v184 = vshrl.u32 %v183, 7
    %v185 = vsub.s32 0, %v184
    %v186 = vrot.slane %v74, %v185
    %v188 = vsel %vm96, %v84, 0
    %v191 = vsel %vm96, %v85, 0
    %v194 = vsel %vm96, %v86, 0
    %v197 = vsel %vm96, %v87, 0
    %199 = vmatprep.subr.mxu0 0.0
    %200 = vmatpush1.msra.mxu0 %v179
    %201 = vmatprep.subr.mxu0 0.0
    %202 = vmatpush1.msra.mxu0 %v180
    %203 = vmatprep.subr.mxu0 0.0
    %204 = vmatpush1.msra.mxu0 %v181
    %205 = vmatprep.subr.mxu0 0.0
    %206 = vmatpush1.msra.mxu0 %v182
    %207 = vmatprep.subr.mxu0 0.0
    %208 = vmatpush1.msra.mxu0 0.0
    %209 = vmatprep.subr.mxu0 0.0
    %210 = vmatpush1.msra.mxu0 0.0
    %211 = vmatprep.subr.mxu0 0.0
    %212 = vmatpush1.msra.mxu0 0.0
    %213 = vmatprep.subr.mxu0 0.0
    %214 = vmatpush1.msra.mxu0 0.0
    %215 = vmatprep.subr.mxu0 0.0
    %216 = vmatpush1.msra.mxu0 0.0
    %217 = vmatprep.subr.mxu0 0.0
    %218 = vmatpush1.msra.mxu0 0.0
    %219 = vmatprep.subr.mxu0 0.0
    %220 = vmatpush1.msra.mxu0 0.0
    %221 = vmatprep.subr.mxu0 0.0
    %222 = vmatpush1.msra.mxu0 0.0
    %223 = vmatprep.subr.mxu0 0.0
    %224 = vmatpush1.msra.mxu0 0.0
    %225 = vmatprep.subr.mxu0 0.0
    %226 = vmatpush1.msra.mxu0 0.0
    %227 = vmatprep.subr.mxu0 0.0
    %228 = vmatpush1.msra.mxu0 0.0
    %229 = vmatprep.subr.mxu0 0.0
    %230 = vmatpush1.msra.mxu0 0.0
    %231 = vmatprep.subr.mxu0 0.0
    %232 = vmatpush1.msra.mxu0 0.0
    %233 = vmatprep.subr.mxu0 0.0
    %234 = vmatpush1.msra.mxu0 0.0
    %235 = vmatprep.subr.mxu0 0.0
    %236 = vmatpush1.msra.mxu0 0.0
    %237 = vmatprep.subr.mxu0 0.0
    %238 = vmatpush1.msra.mxu0 0.0
    %239 = vmatprep.subr.mxu0 0.0
    %240 = vmatpush1.msra.mxu0 0.0
    %241 = vmatprep.subr.mxu0 0.0
    %242 = vmatpush1.msra.mxu0 0.0
    %243 = vmatprep.subr.mxu0 0.0
    %244 = vmatpush1.msra.mxu0 0.0
    %245 = vmatprep.subr.mxu0 0.0
    %246 = vmatpush1.msra.mxu0 0.0
    %247 = vmatprep.subr.mxu0 0.0
    %248 = vmatpush1.msra.mxu0 0.0
    %249 = vmatprep.subr.mxu0 0.0
    %250 = vmatpush1.msra.mxu0 0.0
    %251 = vmatprep.subr.mxu0 0.0
    %252 = vmatpush1.msra.mxu0 0.0
    %253 = vmatprep.subr.mxu0 0.0
    %254 = vmatpush1.msra.mxu0 0.0
    %255 = vmatprep.subr.mxu0 0.0
    %256 = vmatpush1.msra.mxu0 0.0
    %257 = vmatprep.subr.mxu0 0.0
    %258 = vmatpush1.msra.mxu0 0.0
    %259 = vmatprep.subr.mxu0 0.0
    %260 = vmatpush1.msra.mxu0 0.0
    %261 = vmatprep.subr.mxu0 0.0
    %262 = vmatpush1.msra.mxu0 0.0
    %263 = vmatprep.mubr.f32.mxu0 0.0
    %264 = vmatmul.mubr.f32.gmra.mrb[0].mxu0 %v188
    %v265 = vpop.f32.mrb[0].mxu0
    %v266 = vadd.f32 %v186, %v265
    %v267 = vpop.f32.mrb[0].mxu0
    %268 = vmatprep.mubr.f32.mxu0 0.0
    %269 = vmatmul.mubr.f32.gmra.mrb[0].mxu0 %v191
    %v270 = vpop.f32.mrb[0].mxu0
    %v271 = vadd.f32 %v186, %v270
    %v272 = vpop.f32.mrb[0].mxu0
    %273 = vmatprep.mubr.f32.mxu0 0.0
    %274 = vmatmul.mubr.f32.gmra.mrb[0].mxu0 %v194
    %v275 = vpop.f32.mrb[0].mxu0
    %v276 = vadd.f32 %v186, %v275
    %v277 = vpop.f32.mrb[0].mxu0
    %278 = vmatprep.mubr.f32.mxu0 0.0
    %279 = vmatmul.mubr.f32.gmra.mrb[0].mxu0 %v197
    %v280 = vpop.f32.mrb[0].mxu0
    %v281 = vadd.f32 %v186, %v280
    %v282 = vpop.f32.mrb[0].mxu0
    %283 = vdwg.mxu0
    %s284 = scalar_lea.vmem [#allocation7], 64
    %v285 = vld [vmem:[%s284] sm:$0xff]
    %v286 = vld [vmem:[%s284 + $0x8] sm:$0xff]
    %v287 = vld [vmem:[%s284 + $0x10] sm:$0xff]
    %v288 = vld [vmem:[%s284 + $0x18] sm:$0xff]
    %v289 = vlaneseq
    %v290 = vshrl.u32 %v289, 7
    %v291 = vsub.s32 0, %v290
    %v292 = vrot.slane %v75, %v291
    %293 = vmatprep.subr.mxu0 0.0
    %294 = vmatpush1.msra.mxu0 %v285
    %295 = vmatprep.subr.mxu0 0.0
    %296 = vmatpush1.msra.mxu0 %v286
    %297 = vmatprep.subr.mxu0 0.0
    %298 = vmatpush1.msra.mxu0 %v287
    %299 = vmatprep.subr.mxu0 0.0
    %300 = vmatpush1.msra.mxu0 %v288
    %301 = vmatprep.subr.mxu0 0.0
    %302 = vmatpush1.msra.mxu0 0.0
    %303 = vmatprep.subr.mxu0 0.0
    %304 = vmatpush1.msra.mxu0 0.0
    %305 = vmatprep.subr.mxu0 0.0
    %306 = vmatpush1.msra.mxu0 0.0
    %307 = vmatprep.subr.mxu0 0.0
    %308 = vmatpush1.msra.mxu0 0.0
    %309 = vmatprep.subr.mxu0 0.0
    %310 = vmatpush1.msra.mxu0 0.0
    %311 = vmatprep.subr.mxu0 0.0
    %312 = vmatpush1.msra.mxu0 0.0
    %313 = vmatprep.subr.mxu0 0.0
    %314 = vmatpush1.msra.mxu0 0.0
    %315 = vmatprep.subr.mxu0 0.0
    %316 = vmatpush1.msra.mxu0 0.0
    %317 = vmatprep.subr.mxu0 0.0
    %318 = vmatpush1.msra.mxu0 0.0
    %319 = vmatprep.subr.mxu0 0.0
    %320 = vmatpush1.msra.mxu0 0.0
    %321 = vmatprep.subr.mxu0 0.0
    %322 = vmatpush1.msra.mxu0 0.0
    %323 = vmatprep.subr.mxu0 0.0
    %324 = vmatpush1.msra.mxu0 0.0
    %325 = vmatprep.subr.mxu0 0.0
    %326 = vmatpush1.msra.mxu0 0.0
    %327 = vmatprep.subr.mxu0 0.0
    %328 = vmatpush1.msra.mxu0 0.0
    %329 = vmatprep.subr.mxu0 0.0
    %330 = vmatpush1.msra.mxu0 0.0
    %331 = vmatprep.subr.mxu0 0.0
    %332 = vmatpush1.msra.mxu0 0.0
    %333 = vmatprep.subr.mxu0 0.0
    %334 = vmatpush1.msra.mxu0 0.0
    %335 = vmatprep.subr.mxu0 0.0
    %336 = vmatpush1.msra.mxu0 0.0
    %337 = vmatprep.subr.mxu0 0.0
    %338 = vmatpush1.msra.mxu0 0.0
    %339 = vmatprep.subr.mxu0 0.0
    %340 = vmatpush1.msra.mxu0 0.0
    %341 = vmatprep.subr.mxu0 0.0
    %342 = vmatpush1.msra.mxu0 0.0
    %343 = vmatprep.subr.mxu0 0.0
    %344 = vmatpush1.msra.mxu0 0.0
    %345 = vmatprep.subr.mxu0 0.0
    %346 = vmatpush1.msra.mxu0 0.0
    %347 = vmatprep.subr.mxu0 0.0
    %348 = vmatpush1.msra.mxu0 0.0
    %349 = vmatprep.subr.mxu0 0.0
    %350 = vmatpush1.msra.mxu0 0.0
    %351 = vmatprep.subr.mxu0 0.0
    %352 = vmatpush1.msra.mxu0 0.0
    %353 = vmatprep.subr.mxu0 0.0
    %354 = vmatpush1.msra.mxu0 0.0
    %355 = vmatprep.subr.mxu0 0.0
    %356 = vmatpush1.msra.mxu0 0.0
    %357 = vmatprep.mubr.f32.mxu0 0.0
    %358 = vmatmul.mubr.f32.gmra.mrb[0].mxu0 %v188
    %v359 = vpop.f32.mrb[0].mxu0
    %v360 = vadd.f32 %v292, %v359
    %v361 = vpop.f32.mrb[0].mxu0
    %362 = vmatprep.mubr.f32.mxu0 0.0
    %363 = vmatmul.mubr.f32.gmra.mrb[0].mxu0 %v191
    %v364 = vpop.f32.mrb[0].mxu0
    %v365 = vadd.f32 %v292, %v364
    %v366 = vpop.f32.mrb[0].mxu0
    %367 = vmatprep.mubr.f32.mxu0 0.0
    %368 = vmatmul.mubr.f32.gmra.mrb[0].mxu0 %v194
    %v369 = vpop.f32.mrb[0].mxu0
    %v370 = vadd.f32 %v292, %v369
    %v371 = vpop.f32.mrb[0].mxu0
    %372 = vmatprep.mubr.f32.mxu0 0.0
    %373 = vmatmul.mubr.f32.gmra.mrb[0].mxu0 %v197
    %v374 = vpop.f32.mrb[0].mxu0
    %v375 = vadd.f32 %v292, %v374
    %v376 = vpop.f32.mrb[0].mxu0
    %377 = vdwg.mxu0
    %s378 = scalar_lea.vmem [#allocation7], 96
    %v379 = vld [vmem:[%s378] sm:$0xff]
    %v380 = vld [vmem:[%s378 + $0x8] sm:$0xff]
    %v381 = vld [vmem:[%s378 + $0x10] sm:$0xff]
    %v382 = vld [vmem:[%s378 + $0x18] sm:$0xff]
    %vm383 = vcmask 64512
    %v385 = vsel %vm383, %v170, 0
    %v388 = vsel %vm383, %v266, 0
    %v391 = vsel %vm383, %v271, 0
    %393 = vmatprep.subr.mxu0 0.0
    %394 = vmatpush1.xpose.msra.mxu0 %v388
    %395 = vmatprep.subr.mxu0 0.0
    %396 = vmatpush1.xpose.msra.mxu0 %v391
    %397 = vmatprep.subr.mxu0 0.0
    %398 = vmatpush1.xpose.msra.mxu0 0.0
    %399 = vmatprep.subr.mxu0 0.0
    %400 = vmatpush1.xpose.msra.mxu0 0.0
    %401 = vmatprep.subr.mxu0 0.0
    %402 = vmatpush1.xpose.msra.mxu0 0.0
    %403 = vmatprep.subr.mxu0 0.0
    %404 = vmatpush1.xpose.msra.mxu0 0.0
    %405 = vmatprep.subr.mxu0 0.0
    %406 = vmatpush1.xpose.msra.mxu0 0.0
    %407 = vmatprep.subr.mxu0 0.0
    %408 = vmatpush1.xpose.msra.mxu0 0.0
    %409 = vmatprep.subr.mxu0 0.0
    %410 = vmatpush1.xpose.msra.mxu0 0.0
    %411 = vmatprep.subr.mxu0 0.0
    %412 = vmatpush1.xpose.msra.mxu0 0.0
    %413 = vmatprep.subr.mxu0 0.0
    %414 = vmatpush1.xpose.msra.mxu0 0.0
    %415 = vmatprep.subr.mxu0 0.0
    %416 = vmatpush1.xpose.msra.mxu0 0.0
    %417 = vmatprep.subr.mxu0 0.0
    %418 = vmatpush1.xpose.msra.mxu0 0.0
    %419 = vmatprep.subr.mxu0 0.0
    %420 = vmatpush1.xpose.msra.mxu0 0.0
    %421 = vmatprep.subr.mxu0 0.0
    %422 = vmatpush1.xpose.msra.mxu0 0.0
    %423 = vmatprep.subr.mxu0 0.0
    %424 = vmatpush1.xpose.msra.mxu0 0.0
    %425 = vmatprep.subr.mxu0 0.0
    %426 = vmatpush1.xpose.msra.mxu0 0.0
    %427 = vmatprep.subr.mxu0 0.0
    %428 = vmatpush1.xpose.msra.mxu0 0.0
    %429 = vmatprep.subr.mxu0 0.0
    %430 = vmatpush1.xpose.msra.mxu0 0.0
    %431 = vmatprep.subr.mxu0 0.0
    %432 = vmatpush1.xpose.msra.mxu0 0.0
    %433 = vmatprep.subr.mxu0 0.0
    %434 = vmatpush1.xpose.msra.mxu0 0.0
    %435 = vmatprep.subr.mxu0 0.0
    %436 = vmatpush1.xpose.msra.mxu0 0.0
    %437 = vmatprep.subr.mxu0 0.0
    %438 = vmatpush1.xpose.msra.mxu0 0.0
    %439 = vmatprep.subr.mxu0 0.0
    %440 = vmatpush1.xpose.msra.mxu0 0.0
    %441 = vmatprep.subr.mxu0 0.0
    %442 = vmatpush1.xpose.msra.mxu0 0.0
    %443 = vmatprep.subr.mxu0 0.0
    %444 = vmatpush1.xpose.msra.mxu0 0.0
    %445 = vmatprep.subr.mxu0 0.0
    %446 = vmatpush1.xpose.msra.mxu0 0.0
    %447 = vmatprep.subr.mxu0 0.0
    %448 = vmatpush1.xpose.msra.mxu0 0.0
    %449 = vmatprep.subr.mxu0 0.0
    %450 = vmatpush1.xpose.msra.mxu0 0.0
    %451 = vmatprep.subr.mxu0 0.0
    %452 = vmatpush1.xpose.msra.mxu0 0.0
    %453 = vmatprep.subr.mxu0 0.0
    %454 = vmatpush1.xpose.msra.mxu0 0.0
    %455 = vmatprep.subr.mxu0 0.0
    %456 = vmatpush1.xpose.msra.mxu0 0.0
    %457 = vmatprep.mubr.f32.mxu0 0.0
    %458 = vmatmul.mubr.f32.gmra.mrb[0].mxu0 %v385
    %v459 = vpop.f32.mrb[0].mxu0
    %v460 = vadd.f32 0.0, %v459
    %v461 = vpop.f32.mrb[0].mxu0
    %462 = vdwg.mxu0
    %v463 = vmul.f32 %v460, 0.35355338
    %vm464 = vcmask 130048
    %v465 = vsel %vm464, %v463, -inf
    %466 = vmax.xlane.f32.xlu0 %v465
    %v467 = vpop.xlane.xlu0 %466
    %v468 = vsub.f32 %v463, %v467
    %v469 = vmul.f32 %v468, 1.442695
    %v470 = vpow.pop %v469
    %v472 = vsel %vm464, %v470, 0
    %474 = vmatprep.subr.mxu0 0.0
    %475 = vmatpush1.msra.mxu0 %v360
    %476 = vmatprep.subr.mxu0 0.0
    %477 = vmatpush1.msra.mxu0 %v365
    %478 = vmatprep.subr.mxu0 0.0
    %479 = vmatpush1.msra.mxu0 0.0
    %480 = vmatprep.subr.mxu0 0.0
    %481 = vmatpush1.msra.mxu0 0.0
    %482 = vmatprep.subr.mxu0 0.0
    %483 = vmatpush1.msra.mxu0 0.0
    %484 = vmatprep.subr.mxu0 0.0
    %485 = vmatpush1.msra.mxu0 0.0
    %486 = vmatprep.subr.mxu0 0.0
    %487 = vmatpush1.msra.mxu0 0.0
    %488 = vmatprep.subr.mxu0 0.0
    %489 = vmatpush1.msra.mxu0 0.0
    %490 = vmatprep.subr.mxu0 0.0
    %491 = vmatpush1.msra.mxu0 0.0
    %492 = vmatprep.subr.mxu0 0.0
    %493 = vmatpush1.msra.mxu0 0.0
    %494 = vmatprep.subr.mxu0 0.0
    %495 = vmatpush1.msra.mxu0 0.0
    %496 = vmatprep.subr.mxu0 0.0
    %497 = vmatpush1.msra.mxu0 0.0
    %498 = vmatprep.subr.mxu0 0.0
    %499 = vmatpush1.msra.mxu0 0.0
    %500 = vmatprep.subr.mxu0 0.0
    %501 = vmatpush1.msra.mxu0 0.0
    %502 = vmatprep.subr.mxu0 0.0
    %503 = vmatpush1.msra.mxu0 0.0
    %504 = vmatprep.subr.mxu0 0.0
    %505 = vmatpush1.msra.mxu0 0.0
    %506 = vmatprep.subr.mxu0 0.0
    %507 = vmatpush1.msra.mxu0 0.0
    %508 = vmatprep.subr.mxu0 0.0
    %509 = vmatpush1.msra.mxu0 0.0
    %510 = vmatprep.subr.mxu0 0.0
    %511 = vmatpush1.msra.mxu0 0.0
    %512 = vmatprep.subr.mxu0 0.0
    %513 = vmatpush1.msra.mxu0 0.0
    %514 = vmatprep.subr.mxu0 0.0
    %515 = vmatpush1.msra.mxu0 0.0
    %516 = vmatprep.subr.mxu0 0.0
    %517 = vmatpush1.msra.mxu0 0.0
    %518 = vmatprep.subr.mxu0 0.0
    %519 = vmatpush1.msra.mxu0 0.0
    %520 = vmatprep.subr.mxu0 0.0
    %521 = vmatpush1.msra.mxu0 0.0
    %522 = vmatprep.subr.mxu0 0.0
    %523 = vmatpush1.msra.mxu0 0.0
    %524 = vmatprep.subr.mxu0 0.0
    %525 = vmatpush1.msra.mxu0 0.0
    %526 = vmatprep.subr.mxu0 0.0
    %527 = vmatpush1.msra.mxu0 0.0
    %528 = vmatprep.subr.mxu0 0.0
    %529 = vmatpush1.msra.mxu0 0.0
    %530 = vmatprep.subr.mxu0 0.0
    %531 = vmatpush1.msra.mxu0 0.0
    %532 = vmatprep.subr.mxu0 0.0
    %533 = vmatpush1.msra.mxu0 0.0
    %534 = vmatprep.subr.mxu0 0.0
    %535 = vmatpush1.msra.mxu0 0.0
    %536 = vmatprep.subr.mxu0 0.0
    %537 = vmatpush1.msra.mxu0 0.0
    %538 = vmatprep.mubr.f32.mxu0 0.0
    %539 = vmatmul.mubr.f32.gmra.mrb[0].mxu0 %v472
    %v540 = vpop.f32.mrb[0].mxu0
    %v541 = vadd.f32 0.0, %v540
    %v542 = vpop.f32.mrb[0].mxu0
    %543 = vdwg.mxu0
    %v544 = vsel %vm464, %v470, 0.0
    %545 = vadd.xlane.f32.xlu0 %v544
    %v546 = vpop.xlane.xlu0 %545
    %v547 = vrcp.pop %v546
    %v548 = vmul.f32 %v541, %v547
    %v550 = vsel %vm383, %v175, 0
    %v553 = vsel %vm383, %v276, 0
    %v556 = vsel %vm383, %v281, 0
    %558 = vmatprep.subr.mxu0 0.0
    %559 = vmatpush1.xpose.msra.mxu0 %v553
    %560 = vmatprep.subr.mxu0 0.0
    %561 = vmatpush1.xpose.msra.mxu0 %v556
    %562 = vmatprep.subr.mxu0 0.0
    %563 = vmatpush1.xpose.msra.mxu0 0.0
    %564 = vmatprep.subr.mxu0 0.0
    %565 = vmatpush1.xpose.msra.mxu0 0.0
    %566 = vmatprep.subr.mxu0 0.0
    %567 = vmatpush1.xpose.msra.mxu0 0.0
    %568 = vmatprep.subr.mxu0 0.0
    %569 = vmatpush1.xpose.msra.mxu0 0.0
    %570 = vmatprep.subr.mxu0 0.0
    %571 = vmatpush1.xpose.msra.mxu0 0.0
    %572 = vmatprep.subr.mxu0 0.0
    %573 = vmatpush1.xpose.msra.mxu0 0.0
    %574 = vmatprep.subr.mxu0 0.0
    %575 = vmatpush1.xpose.msra.mxu0 0.0
    %576 = vmatprep.subr.mxu0 0.0
    %577 = vmatpush1.xpose.msra.mxu0 0.0
    %578 = vmatprep.subr.mxu0 0.0
    %579 = vmatpush1.xpose.msra.mxu0 0.0
    %580 = vmatprep.subr.mxu0 0.0
    %581 = vmatpush1.xpose.msra.mxu0 0.0
    %582 = vmatprep.subr.mxu0 0.0
    %583 = vmatpush1.xpose.msra.mxu0 0.0
    %584 = vmatprep.subr.mxu0 0.0
    %585 = vmatpush1.xpose.msra.mxu0 0.0
    %586 = vmatprep.subr.mxu0 0.0
    %587 = vmatpush1.xpose.msra.mxu0 0.0
    %588 = vmatprep.subr.mxu0 0.0
    %589 = vmatpush1.xpose.msra.mxu0 0.0
    %590 = vmatprep.subr.mxu0 0.0
    %591 = vmatpush1.xpose.msra.mxu0 0.0
    %592 = vmatprep.subr.mxu0 0.0
    %593 = vmatpush1.xpose.msra.mxu0 0.0
    %594 = vmatprep.subr.mxu0 0.0
    %595 = vmatpush1.xpose.msra.mxu0 0.0
    %596 = vmatprep.subr.mxu0 0.0
    %597 = vmatpush1.xpose.msra.mxu0 0.0
    %598 = vmatprep.subr.mxu0 0.0
    %599 = vmatpush1.xpose.msra.mxu0 0.0
    %600 = vmatprep.subr.mxu0 0.0
    %601 = vmatpush1.xpose.msra.mxu0 0.0
    %602 = vmatprep.subr.mxu0 0.0
    %603 = vmatpush1.xpose.msra.mxu0 0.0
    %604 = vmatprep.subr.mxu0 0.0
    %605 = vmatpush1.xpose.msra.mxu0 0.0
    %606 = vmatprep.subr.mxu0 0.0
    %607 = vmatpush1.xpose.msra.mxu0 0.0
    %608 = vmatprep.subr.mxu0 0.0
    %609 = vmatpush1.xpose.msra.mxu0 0.0
    %610 = vmatprep.subr.mxu0 0.0
    %611 = vmatpush1.xpose.msra.mxu0 0.0
    %612 = vmatprep.subr.mxu0 0.0
    %613 = vmatpush1.xpose.msra.mxu0 0.0
    %614 = vmatprep.subr.mxu0 0.0
    %615 = vmatpush1.xpose.msra.mxu0 0.0
    %616 = vmatprep.subr.mxu0 0.0
    %617 = vmatpush1.xpose.msra.mxu0 0.0
    %618 = vmatprep.subr.mxu0 0.0
    %619 = vmatpush1.xpose.msra.mxu0 0.0
    %620 = vmatprep.subr.mxu0 0.0
    %621 = vmatpush1.xpose.msra.mxu0 0.0
    %622 = vmatprep.mubr.f32.mxu0 0.0
    %623 = vmatmul.mubr.f32.gmra.mrb[0].mxu0 %v550
    %v624 = vpop.f32.mrb[0].mxu0
    %v625 = vadd.f32 0.0, %v624
    %v626 = vpop.f32.mrb[0].mxu0
    %627 = vdwg.mxu0
    %v628 = vmul.f32 %v625, 0.35355338
    %v629 = vsel %vm464, %v628, -inf
    %630 = vmax.xlane.f32.xlu0 %v629
    %v631 = vpop.xlane.xlu0 %630
    %v632 = vsub.f32 %v628, %v631
    %v633 = vmul.f32 %v632, 1.442695
    %v634 = vpow.pop %v633
    %v636 = vsel %vm464, %v634, 0
    %638 = vmatprep.subr.mxu0 0.0
    %639 = vmatpush1.msra.mxu0 %v370
    %640 = vmatprep.subr.mxu0 0.0
    %641 = vmatpush1.msra.mxu0 %v375
    %642 = vmatprep.subr.mxu0 0.0
    %643 = vmatpush1.msra.mxu0 0.0
    %644 = vmatprep.subr.mxu0 0.0
    %645 = vmatpush1.msra.mxu0 0.0
    %646 = vmatprep.subr.mxu0 0.0
    %647 = vmatpush1.msra.mxu0 0.0
    %648 = vmatprep.subr.mxu0 0.0
    %649 = vmatpush1.msra.mxu0 0.0
    %650 = vmatprep.subr.mxu0 0.0
    %651 = vmatpush1.msra.mxu0 0.0
    %652 = vmatprep.subr.mxu0 0.0
    %653 = vmatpush1.msra.mxu0 0.0
    %654 = vmatprep.subr.mxu0 0.0
    %655 = vmatpush1.msra.mxu0 0.0
    %656 = vmatprep.subr.mxu0 0.0
    %657 = vmatpush1.msra.mxu0 0.0
    %658 = vmatprep.subr.mxu0 0.0
    %659 = vmatpush1.msra.mxu0 0.0
    %660 = vmatprep.subr.mxu0 0.0
    %661 = vmatpush1.msra.mxu0 0.0
    %662 = vmatprep.subr.mxu0 0.0
    %663 = vmatpush1.msra.mxu0 0.0
    %664 = vmatprep.subr.mxu0 0.0
    %665 = vmatpush1.msra.mxu0 0.0
    %666 = vmatprep.subr.mxu0 0.0
    %667 = vmatpush1.msra.mxu0 0.0
    %668 = vmatprep.subr.mxu0 0.0
    %669 = vmatpush1.msra.mxu0 0.0
    %670 = vmatprep.subr.mxu0 0.0
    %671 = vmatpush1.msra.mxu0 0.0
    %672 = vmatprep.subr.mxu0 0.0
    %673 = vmatpush1.msra.mxu0 0.0
    %674 = vmatprep.subr.mxu0 0.0
    %675 = vmatpush1.msra.mxu0 0.0
    %676 = vmatprep.subr.mxu0 0.0
    %677 = vmatpush1.msra.mxu0 0.0
    %678 = vmatprep.subr.mxu0 0.0
    %679 = vmatpush1.msra.mxu0 0.0
    %680 = vmatprep.subr.mxu0 0.0
    %681 = vmatpush1.msra.mxu0 0.0
    %682 = vmatprep.subr.mxu0 0.0
    %683 = vmatpush1.msra.mxu0 0.0
    %684 = vmatprep.subr.mxu0 0.0
    %685 = vmatpush1.msra.mxu0 0.0
    %686 = vmatprep.subr.mxu0 0.0
    %687 = vmatpush1.msra.mxu0 0.0
    %688 = vmatprep.subr.mxu0 0.0
    %689 = vmatpush1.msra.mxu0 0.0
    %690 = vmatprep.subr.mxu0 0.0
    %691 = vmatpush1.msra.mxu0 0.0
    %692 = vmatprep.subr.mxu0 0.0
    %693 = vmatpush1.msra.mxu0 0.0
    %694 = vmatprep.subr.mxu0 0.0
    %695 = vmatpush1.msra.mxu0 0.0
    %696 = vmatprep.subr.mxu0 0.0
    %697 = vmatpush1.msra.mxu0 0.0
    %698 = vmatprep.subr.mxu0 0.0
    %699 = vmatpush1.msra.mxu0 0.0
    %700 = vmatprep.subr.mxu0 0.0
    %701 = vmatpush1.msra.mxu0 0.0
    %702 = vmatprep.mubr.f32.mxu0 0.0
    %703 = vmatmul.mubr.f32.gmra.mrb[0].mxu0 %v636
    %v704 = vpop.f32.mrb[0].mxu0
    %v705 = vadd.f32 0.0, %v704
    %v706 = vpop.f32.mrb[0].mxu0
    %707 = vdwg.mxu0
    %v708 = vsel %vm464, %v634, 0.0
    %709 = vadd.xlane.f32.xlu0 %v708
    %v710 = vpop.xlane.xlu0 %709
    %v711 = vrcp.pop %v710
    %v712 = vmul.f32 %v705, %v711
    %713 = vrot.lane.b32.xlu0 %v170, 120
    %v714 = vpop.permute.xlu0 %713
    %715 = vrot.lane.b32.xlu0 %v266, 120
    %v716 = vpop.permute.xlu0 %715
    %717 = vrot.lane.b32.xlu0 %v271, 120
    %v718 = vpop.permute.xlu0 %717
    %v719 = vsel %vm383, %v714, 0
    %v721 = vsel %vm383, %v716, 0
    %v723 = vsel %vm383, %v718, 0
    %725 = vmatprep.subr.mxu0 0.0
    %726 = vmatpush1.xpose.msra.mxu0 %v721
    %727 = vmatprep.subr.mxu0 0.0
    %728 = vmatpush1.xpose.msra.mxu0 %v723
    %729 = vmatprep.subr.mxu0 0.0
    %730 = vmatpush1.xpose.msra.mxu0 0.0
    %731 = vmatprep.subr.mxu0 0.0
    %732 = vmatpush1.xpose.msra.mxu0 0.0
    %733 = vmatprep.subr.mxu0 0.0
    %734 = vmatpush1.xpose.msra.mxu0 0.0
    %735 = vmatprep.subr.mxu0 0.0
    %736 = vmatpush1.xpose.msra.mxu0 0.0
    %737 = vmatprep.subr.mxu0 0.0
    %738 = vmatpush1.xpose.msra.mxu0 0.0
    %739 = vmatprep.subr.mxu0 0.0
    %740 = vmatpush1.xpose.msra.mxu0 0.0
    %741 = vmatprep.subr.mxu0 0.0
    %742 = vmatpush1.xpose.msra.mxu0 0.0
    %743 = vmatprep.subr.mxu0 0.0
    %744 = vmatpush1.xpose.msra.mxu0 0.0
    %745 = vmatprep.subr.mxu0 0.0
    %746 = vmatpush1.xpose.msra.mxu0 0.0
    %747 = vmatprep.subr.mxu0 0.0
    %748 = vmatpush1.xpose.msra.mxu0 0.0
    %749 = vmatprep.subr.mxu0 0.0
    %750 = vmatpush1.xpose.msra.mxu0 0.0
    %751 = vmatprep.subr.mxu0 0.0
    %752 = vmatpush1.xpose.msra.mxu0 0.0
    %753 = vmatprep.subr.mxu0 0.0
    %754 = vmatpush1.xpose.msra.mxu0 0.0
    %755 = vmatprep.subr.mxu0 0.0
    %756 = vmatpush1.xpose.msra.mxu0 0.0
    %757 = vmatprep.subr.mxu0 0.0
    %758 = vmatpush1.xpose.msra.mxu0 0.0
    %759 = vmatprep.subr.mxu0 0.0
    %760 = vmatpush1.xpose.msra.mxu0 0.0
    %761 = vmatprep.subr.mxu0 0.0
    %762 = vmatpush1.xpose.msra.mxu0 0.0
    %763 = vmatprep.subr.mxu0 0.0
    %764 = vmatpush1.xpose.msra.mxu0 0.0
    %765 = vmatprep.subr.mxu0 0.0
    %766 = vmatpush1.xpose.msra.mxu0 0.0
    %767 = vmatprep.subr.mxu0 0.0
    %768 = vmatpush1.xpose.msra.mxu0 0.0
    %769 = vmatprep.subr.mxu0 0.0
    %770 = vmatpush1.xpose.msra.mxu0 0.0
    %771 = vmatprep.subr.mxu0 0.0
    %772 = vmatpush1.xpose.msra.mxu0 0.0
    %773 = vmatprep.subr.mxu0 0.0
    %774 = vmatpush1.xpose.msra.mxu0 0.0
    %775 = vmatprep.subr.mxu0 0.0
    %776 = vmatpush1.xpose.msra.mxu0 0.0
    %777 = vmatprep.subr.mxu0 0.0
    %778 = vmatpush1.xpose.msra.mxu0 0.0
    %779 = vmatprep.subr.mxu0 0.0
    %780 = vmatpush1.xpose.msra.mxu0 0.0
    %781 = vmatprep.subr.mxu0 0.0
    %782 = vmatpush1.xpose.msra.mxu0 0.0
    %783 = vmatprep.subr.mxu0 0.0
    %784 = vmatpush1.xpose.msra.mxu0 0.0
    %785 = vmatprep.subr.mxu0 0.0
    %786 = vmatpush1.xpose.msra.mxu0 0.0
    %787 = vmatprep.subr.mxu0 0.0
    %788 = vmatpush1.xpose.msra.mxu0 0.0
    %789 = vmatprep.mubr.f32.mxu0 0.0
    %790 = vmatmul.mubr.f32.gmra.mrb[0].mxu0 %v719
    %v791 = vpop.f32.mrb[0].mxu0
    %v792 = vadd.f32 0.0, %v791
    %v793 = vpop.f32.mrb[0].mxu0
    %794 = vdwg.mxu0
    %v795 = vmul.f32 %v792, 0.35355338
    %v796 = vsel %vm464, %v795, -inf
    %797 = vmax.xlane.f32.xlu0 %v796
    %v798 = vpop.xlane.xlu0 %797
    %v799 = vsub.f32 %v795, %v798
    %v800 = vmul.f32 %v799, 1.442695
    %v801 = vpow.pop %v800
    %804 = vrot.lane.b32.xlu0 %v360, 120
    %v805 = vpop.permute.xlu0 %804
    %806 = vrot.lane.b32.xlu0 %v365, 120
    %v807 = vpop.permute.xlu0 %806
    %v811 = vsel %vm464, %v801, 0
    %813 = vmatprep.subr.mxu0 0.0
    %814 = vmatpush1.msra.mxu0 %v805
    %815 = vmatprep.subr.mxu0 0.0
    %816 = vmatpush1.msra.mxu0 %v807
    %817 = vmatprep.subr.mxu0 0.0
    %818 = vmatpush1.msra.mxu0 0.0
    %819 = vmatprep.subr.mxu0 0.0
    %820 = vmatpush1.msra.mxu0 0.0
    %821 = vmatprep.subr.mxu0 0.0
    %822 = vmatpush1.msra.mxu0 0.0
    %823 = vmatprep.subr.mxu0 0.0
    %824 = vmatpush1.msra.mxu0 0.0
    %825 = vmatprep.subr.mxu0 0.0
    %826 = vmatpush1.msra.mxu0 0.0
    %827 = vmatprep.subr.mxu0 0.0
    %828 = vmatpush1.msra.mxu0 0.0
    %829 = vmatprep.subr.mxu0 0.0
    %830 = vmatpush1.msra.mxu0 0.0
    %831 = vmatprep.subr.mxu0 0.0
    %832 = vmatpush1.msra.mxu0 0.0
    %833 = vmatprep.subr.mxu0 0.0
    %834 = vmatpush1.msra.mxu0 0.0
    %835 = vmatprep.subr.mxu0 0.0
    %836 = vmatpush1.msra.mxu0 0.0
    %837 = vmatprep.subr.mxu0 0.0
    %838 = vmatpush1.msra.mxu0 0.0
    %839 = vmatprep.subr.mxu0 0.0
    %840 = vmatpush1.msra.mxu0 0.0
    %841 = vmatprep.subr.mxu0 0.0
    %842 = vmatpush1.msra.mxu0 0.0
    %843 = vmatprep.subr.mxu0 0.0
    %844 = vmatpush1.msra.mxu0 0.0
    %845 = vmatprep.subr.mxu0 0.0
    %846 = vmatpush1.msra.mxu0 0.0
    %847 = vmatprep.subr.mxu0 0.0
    %848 = vmatpush1.msra.mxu0 0.0
    %849 = vmatprep.subr.mxu0 0.0
    %850 = vmatpush1.msra.mxu0 0.0
    %851 = vmatprep.subr.mxu0 0.0
    %852 = vmatpush1.msra.mxu0 0.0
    %853 = vmatprep.subr.mxu0 0.0
    %854 = vmatpush1.msra.mxu0 0.0
    %855 = vmatprep.subr.mxu0 0.0
    %856 = vmatpush1.msra.mxu0 0.0
    %857 = vmatprep.subr.mxu0 0.0
    %858 = vmatpush1.msra.mxu0 0.0
    %859 = vmatprep.subr.mxu0 0.0
    %860 = vmatpush1.msra.mxu0 0.0
    %861 = vmatprep.subr.mxu0 0.0
    %862 = vmatpush1.msra.mxu0 0.0
    %863 = vmatprep.subr.mxu0 0.0
    %864 = vmatpush1.msra.mxu0 0.0
    %865 = vmatprep.subr.mxu0 0.0
    %866 = vmatpush1.msra.mxu0 0.0
    %867 = vmatprep.subr.mxu0 0.0
    %868 = vmatpush1.msra.mxu0 0.0
    %869 = vmatprep.subr.mxu0 0.0
    %870 = vmatpush1.msra.mxu0 0.0
    %871 = vmatprep.subr.mxu0 0.0
    %872 = vmatpush1.msra.mxu0 0.0
    %873 = vmatprep.subr.mxu0 0.0
    %874 = vmatpush1.msra.mxu0 0.0
    %875 = vmatprep.subr.mxu0 0.0
    %876 = vmatpush1.msra.mxu0 0.0
    %877 = vmatprep.mubr.f32.mxu0 0.0
    %878 = vmatmul.mubr.f32.gmra.mrb[0].mxu0 %v811
    %v879 = vpop.f32.mrb[0].mxu0
    %v880 = vadd.f32 0.0, %v879
    %v881 = vpop.f32.mrb[0].mxu0
    %882 = vdwg.mxu0
    %v883 = vsel %vm464, %v801, 0.0
    %884 = vadd.xlane.f32.xlu0 %v883
    %v885 = vpop.xlane.xlu0 %884
    %v886 = vrcp.pop %v885
    %v887 = vmul.f32 %v880, %v886
    %v889 = vsel %vm383, %v887, 0
    %891 = vmatprep.subr.mxu0 0.0
    %892 = vmatpush1.msra.mxu0 %v380
    %893 = vmatprep.subr.mxu0 0.0
    %894 = vmatpush1.msra.mxu0 0.0
    %895 = vmatprep.subr.mxu0 0.0
    %896 = vmatpush1.msra.mxu0 0.0
    %897 = vmatprep.subr.mxu0 0.0
    %898 = vmatpush1.msra.mxu0 0.0
    %899 = vmatprep.subr.mxu0 0.0
    %900 = vmatpush1.msra.mxu0 0.0
    %901 = vmatprep.subr.mxu0 0.0
    %902 = vmatpush1.msra.mxu0 0.0
    %903 = vmatprep.subr.mxu0 0.0
    %904 = vmatpush1.msra.mxu0 0.0
    %905 = vmatprep.subr.mxu0 0.0
    %906 = vmatpush1.msra.mxu0 0.0
    %907 = vmatprep.subr.mxu0 0.0
    %908 = vmatpush1.msra.mxu0 0.0
    %909 = vmatprep.subr.mxu0 0.0
    %910 = vmatpush1.msra.mxu0 0.0
    %911 = vmatprep.subr.mxu0 0.0
    %912 = vmatpush1.msra.mxu0 0.0
    %913 = vmatprep.subr.mxu0 0.0
    %914 = vmatpush1.msra.mxu0 0.0
    %915 = vmatprep.subr.mxu0 0.0
    %916 = vmatpush1.msra.mxu0 0.0
    %917 = vmatprep.subr.mxu0 0.0
    %918 = vmatpush1.msra.mxu0 0.0
    %919 = vmatprep.subr.mxu0 0.0
    %920 = vmatpush1.msra.mxu0 0.0
    %921 = vmatprep.subr.mxu0 0.0
    %922 = vmatpush1.msra.mxu0 0.0
    %923 = vmatprep.subr.mxu0 0.0
    %924 = vmatpush1.msra.mxu0 0.0
    %925 = vmatprep.subr.mxu0 0.0
    %926 = vmatpush1.msra.mxu0 0.0
    %927 = vmatprep.subr.mxu0 0.0
    %928 = vmatpush1.msra.mxu0 0.0
    %929 = vmatprep.subr.mxu0 0.0
    %930 = vmatpush1.msra.mxu0 0.0
    %931 = vmatprep.subr.mxu0 0.0
    %932 = vmatpush1.msra.mxu0 0.0
    %933 = vmatprep.subr.mxu0 0.0
    %934 = vmatpush1.msra.mxu0 0.0
    %935 = vmatprep.subr.mxu0 0.0
    %936 = vmatpush1.msra.mxu0 0.0
    %937 = vmatprep.subr.mxu0 0.0
    %938 = vmatpush1.msra.mxu0 0.0
    %939 = vmatprep.subr.mxu0 0.0
    %940 = vmatpush1.msra.mxu0 0.0
    %941 = vmatprep.subr.mxu0 0.0
    %942 = vmatpush1.msra.mxu0 0.0
    %943 = vmatprep.subr.mxu0 0.0
    %944 = vmatpush1.msra.mxu0 0.0
    %945 = vmatprep.subr.mxu0 0.0
    %946 = vmatpush1.msra.mxu0 0.0
    %947 = vmatprep.subr.mxu0 0.0
    %948 = vmatpush1.msra.mxu0 0.0
    %949 = vmatprep.subr.mxu0 0.0
    %950 = vmatpush1.msra.mxu0 0.0
    %951 = vmatprep.subr.mxu0 0.0
    %952 = vmatpush1.msra.mxu0 0.0
    %953 = vmatprep.subr.mxu0 0.0
    %954 = vmatpush1.msra.mxu0 0.0
    %955 = vmatprep.mubr.f32.mxu0 0.0
    %956 = vmatmul.mubr.f32.gmra.mrb[0].mxu0 %v889
    %v957 = vpop.f32.mrb[0].mxu0
    %v958 = vadd.f32 0.0, %v957
    %v959 = vpop.f32.mrb[0].mxu0
    %960 = vdwg.mxu0
    %v962 = vsel %vm383, %v548, 0
    %964 = vmatprep.subr.mxu0 0.0
    %965 = vmatpush1.msra.mxu0 %v379
    %966 = vmatprep.subr.mxu0 0.0
    %967 = vmatpush1.msra.mxu0 0.0
    %968 = vmatprep.subr.mxu0 0.0
    %969 = vmatpush1.msra.mxu0 0.0
    %970 = vmatprep.subr.mxu0 0.0
    %971 = vmatpush1.msra.mxu0 0.0
    %972 = vmatprep.subr.mxu0 0.0
    %973 = vmatpush1.msra.mxu0 0.0
    %974 = vmatprep.subr.mxu0 0.0
    %975 = vmatpush1.msra.mxu0 0.0
    %976 = vmatprep.subr.mxu0 0.0
    %977 = vmatpush1.msra.mxu0 0.0
    %978 = vmatprep.subr.mxu0 0.0
    %979 = vmatpush1.msra.mxu0 0.0
    %980 = vmatprep.subr.mxu0 0.0
    %981 = vmatpush1.msra.mxu0 0.0
    %982 = vmatprep.subr.mxu0 0.0
    %983 = vmatpush1.msra.mxu0 0.0
    %984 = vmatprep.subr.mxu0 0.0
    %985 = vmatpush1.msra.mxu0 0.0
    %986 = vmatprep.subr.mxu0 0.0
    %987 = vmatpush1.msra.mxu0 0.0
    %988 = vmatprep.subr.mxu0 0.0
    %989 = vmatpush1.msra.mxu0 0.0
    %990 = vmatprep.subr.mxu0 0.0
    %991 = vmatpush1.msra.mxu0 0.0
    %992 = vmatprep.subr.mxu0 0.0
    %993 = vmatpush1.msra.mxu0 0.0
    %994 = vmatprep.subr.mxu0 0.0
    %995 = vmatpush1.msra.mxu0 0.0
    %996 = vmatprep.subr.mxu0 0.0
    %997 = vmatpush1.msra.mxu0 0.0
    %998 = vmatprep.subr.mxu0 0.0
    %999 = vmatpush1.msra.mxu0 0.0
    %1000 = vmatprep.subr.mxu0 0.0
    %1001 = vmatpush1.msra.mxu0 0.0
    %1002 = vmatprep.subr.mxu0 0.0
    %1003 = vmatpush1.msra.mxu0 0.0
    %1004 = vmatprep.subr.mxu0 0.0
    %1005 = vmatpush1.msra.mxu0 0.0
    %1006 = vmatprep.subr.mxu0 0.0
    %1007 = vmatpush1.msra.mxu0 0.0
    %1008 = vmatprep.subr.mxu0 0.0
    %1009 = vmatpush1.msra.mxu0 0.0
    %1010 = vmatprep.subr.mxu0 0.0
    %1011 = vmatpush1.msra.mxu0 0.0
    %1012 = vmatprep.subr.mxu0 0.0
    %1013 = vmatpush1.msra.mxu0 0.0
    %1014 = vmatprep.subr.mxu0 0.0
    %1015 = vmatpush1.msra.mxu0 0.0
    %1016 = vmatprep.subr.mxu0 0.0
    %1017 = vmatpush1.msra.mxu0 0.0
    %1018 = vmatprep.subr.mxu0 0.0
    %1019 = vmatpush1.msra.mxu0 0.0
    %1020 = vmatprep.subr.mxu0 0.0
    %1021 = vmatpush1.msra.mxu0 0.0
    %1022 = vmatprep.subr.mxu0 0.0
    %1023 = vmatpush1.msra.mxu0 0.0
    %1024 = vmatprep.subr.mxu0 0.0
    %1025 = vmatpush1.msra.mxu0 0.0
    %1026 = vmatprep.subr.mxu0 0.0
    %1027 = vmatpush1.msra.mxu0 0.0
    %1028 = vmatprep.mubr.f32.mxu0 0.0
    %1029 = vmatmul.mubr.f32.gmra.mrb[0].mxu0 %v962
    %v1030 = vpop.f32.mrb[0].mxu0
    %v1031 = vadd.f32 %v958, %v1030
    %v1032 = vpop.f32.mrb[0].mxu0
    %1033 = vdwg.mxu0
    %1034 = vrot.lane.b32.xlu0 %v175, 120
    %v1035 = vpop.permute.xlu0 %1034
    %1036 = vrot.lane.b32.xlu0 %v276, 120
    %v1037 = vpop.permute.xlu0 %1036
    %1038 = vrot.lane.b32.xlu0 %v281, 120
    %v1039 = vpop.permute.xlu0 %1038
    %v1040 = vsel %vm383, %v1035, 0
    %v1042 = vsel %vm383, %v1037, 0
    %v1044 = vsel %vm383, %v1039, 0
    %1046 = vmatprep.subr.mxu0 0.0
    %1047 = vmatpush1.xpose.msra.mxu0 %v1042
    %1048 = vmatprep.subr.mxu0 0.0
    %1049 = vmatpush1.xpose.msra.mxu0 %v1044
    %1050 = vmatprep.subr.mxu0 0.0
    %1051 = vmatpush1.xpose.msra.mxu0 0.0
    %1052 = vmatprep.subr.mxu0 0.0
    %1053 = vmatpush1.xpose.msra.mxu0 0.0
    %1054 = vmatprep.subr.mxu0 0.0
    %1055 = vmatpush1.xpose.msra.mxu0 0.0
    %1056 = vmatprep.subr.mxu0 0.0
    %1057 = vmatpush1.xpose.msra.mxu0 0.0
    %1058 = vmatprep.subr.mxu0 0.0
    %1059 = vmatpush1.xpose.msra.mxu0 0.0
    %1060 = vmatprep.subr.mxu0 0.0
    %1061 = vmatpush1.xpose.msra.mxu0 0.0
    %1062 = vmatprep.subr.mxu0 0.0
    %1063 = vmatpush1.xpose.msra.mxu0 0.0
    %1064 = vmatprep.subr.mxu0 0.0
    %1065 = vmatpush1.xpose.msra.mxu0 0.0
    %1066 = vmatprep.subr.mxu0 0.0
    %1067 = vmatpush1.xpose.msra.mxu0 0.0
    %1068 = vmatprep.subr.mxu0 0.0
    %1069 = vmatpush1.xpose.msra.mxu0 0.0
    %1070 = vmatprep.subr.mxu0 0.0
    %1071 = vmatpush1.xpose.msra.mxu0 0.0
    %1072 = vmatprep.subr.mxu0 0.0
    %1073 = vmatpush1.xpose.msra.mxu0 0.0
    %1074 = vmatprep.subr.mxu0 0.0
    %1075 = vmatpush1.xpose.msra.mxu0 0.0
    %1076 = vmatprep.subr.mxu0 0.0
    %1077 = vmatpush1.xpose.msra.mxu0 0.0
    %1078 = vmatprep.subr.mxu0 0.0
    %1079 = vmatpush1.xpose.msra.mxu0 0.0
    %1080 = vmatprep.subr.mxu0 0.0
    %1081 = vmatpush1.xpose.msra.mxu0 0.0
    %1082 = vmatprep.subr.mxu0 0.0
    %1083 = vmatpush1.xpose.msra.mxu0 0.0
    %1084 = vmatprep.subr.mxu0 0.0
    %1085 = vmatpush1.xpose.msra.mxu0 0.0
    %1086 = vmatprep.subr.mxu0 0.0
    %1087 = vmatpush1.xpose.msra.mxu0 0.0
    %1088 = vmatprep.subr.mxu0 0.0
    %1089 = vmatpush1.xpose.msra.mxu0 0.0
    %1090 = vmatprep.subr.mxu0 0.0
    %1091 = vmatpush1.xpose.msra.mxu0 0.0
    %1092 = vmatprep.subr.mxu0 0.0
    %1093 = vmatpush1.xpose.msra.mxu0 0.0
    %1094 = vmatprep.subr.mxu0 0.0
    %1095 = vmatpush1.xpose.msra.mxu0 0.0
    %1096 = vmatprep.subr.mxu0 0.0
    %1097 = vmatpush1.xpose.msra.mxu0 0.0
    %1098 = vmatprep.subr.mxu0 0.0
    %1099 = vmatpush1.xpose.msra.mxu0 0.0
    %1100 = vmatprep.subr.mxu0 0.0
    %1101 = vmatpush1.xpose.msra.mxu0 0.0
    %1102 = vmatprep.subr.mxu0 0.0
    %1103 = vmatpush1.xpose.msra.mxu0 0.0
    %1104 = vmatprep.subr.mxu0 0.0
    %1105 = vmatpush1.xpose.msra.mxu0 0.0
    %1106 = vmatprep.subr.mxu0 0.0
    %1107 = vmatpush1.xpose.msra.mxu0 0.0
    %1108 = vmatprep.subr.mxu0 0.0
    %1109 = vmatpush1.xpose.msra.mxu0 0.0
    %1110 = vmatprep.mubr.f32.mxu0 0.0
    %1111 = vmatmul.mubr.f32.gmra.mrb[0].mxu0 %v1040
    %v1112 = vpop.f32.mrb[0].mxu0
    %v1113 = vadd.f32 0.0, %v1112
    %v1114 = vpop.f32.mrb[0].mxu0
    %1115 = vdwg.mxu0
    %v1116 = vmul.f32 %v1113, 0.35355338
    %v1117 = vsel %vm464, %v1116, -inf
    %1118 = vmax.xlane.f32.xlu0 %v1117
    %v1119 = vpop.xlane.xlu0 %1118
    %v1120 = vsub.f32 %v1116, %v1119
    %v1121 = vmul.f32 %v1120, 1.442695
    %v1122 = vpow.pop %v1121
    %1125 = vrot.lane.b32.xlu0 %v370, 120
    %v1126 = vpop.permute.xlu0 %1125
    %1127 = vrot.lane.b32.xlu0 %v375, 120
    %v1128 = vpop.permute.xlu0 %1127
    %v1132 = vsel %vm464, %v1122, 0
    %1134 = vmatprep.subr.mxu0 0.0
    %1135 = vmatpush1.msra.mxu0 %v1126
    %1136 = vmatprep.subr.mxu0 0.0
    %1137 = vmatpush1.msra.mxu0 %v1128
    %1138 = vmatprep.subr.mxu0 0.0
    %1139 = vmatpush1.msra.mxu0 0.0
    %1140 = vmatprep.subr.mxu0 0.0
    %1141 = vmatpush1.msra.mxu0 0.0
    %1142 = vmatprep.subr.mxu0 0.0
    %1143 = vmatpush1.msra.mxu0 0.0
    %1144 = vmatprep.subr.mxu0 0.0
    %1145 = vmatpush1.msra.mxu0 0.0
    %1146 = vmatprep.subr.mxu0 0.0
    %1147 = vmatpush1.msra.mxu0 0.0
    %1148 = vmatprep.subr.mxu0 0.0
    %1149 = vmatpush1.msra.mxu0 0.0
    %1150 = vmatprep.subr.mxu0 0.0
    %1151 = vmatpush1.msra.mxu0 0.0
    %1152 = vmatprep.subr.mxu0 0.0
    %1153 = vmatpush1.msra.mxu0 0.0
    %1154 = vmatprep.subr.mxu0 0.0
    %1155 = vmatpush1.msra.mxu0 0.0
    %1156 = vmatprep.subr.mxu0 0.0
    %1157 = vmatpush1.msra.mxu0 0.0
    %1158 = vmatprep.subr.mxu0 0.0
    %1159 = vmatpush1.msra.mxu0 0.0
    %1160 = vmatprep.subr.mxu0 0.0
    %1161 = vmatpush1.msra.mxu0 0.0
    %1162 = vmatprep.subr.mxu0 0.0
    %1163 = vmatpush1.msra.mxu0 0.0
    %1164 = vmatprep.subr.mxu0 0.0
    %1165 = vmatpush1.msra.mxu0 0.0
    %1166 = vmatprep.subr.mxu0 0.0
    %1167 = vmatpush1.msra.mxu0 0.0
    %1168 = vmatprep.subr.mxu0 0.0
    %1169 = vmatpush1.msra.mxu0 0.0
    %1170 = vmatprep.subr.mxu0 0.0
    %1171 = vmatpush1.msra.mxu0 0.0
    %1172 = vmatprep.subr.mxu0 0.0
    %1173 = vmatpush1.msra.mxu0 0.0
    %1174 = vmatprep.subr.mxu0 0.0
    %1175 = vmatpush1.msra.mxu0 0.0
    %1176 = vmatprep.subr.mxu0 0.0
    %1177 = vmatpush1.msra.mxu0 0.0
    %1178 = vmatprep.subr.mxu0 0.0
    %1179 = vmatpush1.msra.mxu0 0.0
    %1180 = vmatprep.subr.mxu0 0.0
    %1181 = vmatpush1.msra.mxu0 0.0
    %1182 = vmatprep.subr.mxu0 0.0
    %1183 = vmatpush1.msra.mxu0 0.0
    %1184 = vmatprep.subr.mxu0 0.0
    %1185 = vmatpush1.msra.mxu0 0.0
    %1186 = vmatprep.subr.mxu0 0.0
    %1187 = vmatpush1.msra.mxu0 0.0
    %1188 = vmatprep.subr.mxu0 0.0
    %1189 = vmatpush1.msra.mxu0 0.0
    %1190 = vmatprep.subr.mxu0 0.0
    %1191 = vmatpush1.msra.mxu0 0.0
    %1192 = vmatprep.subr.mxu0 0.0
    %1193 = vmatpush1.msra.mxu0 0.0
    %1194 = vmatprep.subr.mxu0 0.0
    %1195 = vmatpush1.msra.mxu0 0.0
    %1196 = vmatprep.subr.mxu0 0.0
    %1197 = vmatpush1.msra.mxu0 0.0
    %1198 = vmatprep.mubr.f32.mxu0 0.0
    %1199 = vmatmul.mubr.f32.gmra.mrb[0].mxu0 %v1132
    %v1200 = vpop.f32.mrb[0].mxu0
    %v1201 = vadd.f32 0.0, %v1200
    %v1202 = vpop.f32.mrb[0].mxu0
    %1203 = vdwg.mxu0
    %v1204 = vsel %vm464, %v1122, 0.0
    %1205 = vadd.xlane.f32.xlu0 %v1204
    %v1206 = vpop.xlane.xlu0 %1205
    %v1207 = vrcp.pop %v1206
    %v1208 = vmul.f32 %v1201, %v1207
    %v1210 = vsel %vm383, %v1208, 0
    %1212 = vmatprep.subr.mxu0 0.0
    %1213 = vmatpush1.msra.mxu0 %v380
    %1214 = vmatprep.subr.mxu0 0.0
    %1215 = vmatpush1.msra.mxu0 0.0
    %1216 = vmatprep.subr.mxu0 0.0
    %1217 = vmatpush1.msra.mxu0 0.0
    %1218 = vmatprep.subr.mxu0 0.0
    %1219 = vmatpush1.msra.mxu0 0.0
    %1220 = vmatprep.subr.mxu0 0.0
    %1221 = vmatpush1.msra.mxu0 0.0
    %1222 = vmatprep.subr.mxu0 0.0
    %1223 = vmatpush1.msra.mxu0 0.0
    %1224 = vmatprep.subr.mxu0 0.0
    %1225 = vmatpush1.msra.mxu0 0.0
    %1226 = vmatprep.subr.mxu0 0.0
    %1227 = vmatpush1.msra.mxu0 0.0
    %1228 = vmatprep.subr.mxu0 0.0
    %1229 = vmatpush1.msra.mxu0 0.0
    %1230 = vmatprep.subr.mxu0 0.0
    %1231 = vmatpush1.msra.mxu0 0.0
    %1232 = vmatprep.subr.mxu0 0.0
    %1233 = vmatpush1.msra.mxu0 0.0
    %1234 = vmatprep.subr.mxu0 0.0
    %1235 = vmatpush1.msra.mxu0 0.0
    %1236 = vmatprep.subr.mxu0 0.0
    %1237 = vmatpush1.msra.mxu0 0.0
    %1238 = vmatprep.subr.mxu0 0.0
    %1239 = vmatpush1.msra.mxu0 0.0
    %1240 = vmatprep.subr.mxu0 0.0
    %1241 = vmatpush1.msra.mxu0 0.0
    %1242 = vmatprep.subr.mxu0 0.0
    %1243 = vmatpush1.msra.mxu0 0.0
    %1244 = vmatprep.subr.mxu0 0.0
    %1245 = vmatpush1.msra.mxu0 0.0
    %1246 = vmatprep.subr.mxu0 0.0
    %1247 = vmatpush1.msra.mxu0 0.0
    %1248 = vmatprep.subr.mxu0 0.0
    %1249 = vmatpush1.msra.mxu0 0.0
    %1250 = vmatprep.subr.mxu0 0.0
    %1251 = vmatpush1.msra.mxu0 0.0
    %1252 = vmatprep.subr.mxu0 0.0
    %1253 = vmatpush1.msra.mxu0 0.0
    %1254 = vmatprep.subr.mxu0 0.0
    %1255 = vmatpush1.msra.mxu0 0.0
    %1256 = vmatprep.subr.mxu0 0.0
    %1257 = vmatpush1.msra.mxu0 0.0
    %1258 = vmatprep.subr.mxu0 0.0
    %1259 = vmatpush1.msra.mxu0 0.0
    %1260 = vmatprep.subr.mxu0 0.0
    %1261 = vmatpush1.msra.mxu0 0.0
    %1262 = vmatprep.subr.mxu0 0.0
    %1263 = vmatpush1.msra.mxu0 0.0
    %1264 = vmatprep.subr.mxu0 0.0
    %1265 = vmatpush1.msra.mxu0 0.0
    %1266 = vmatprep.subr.mxu0 0.0
    %1267 = vmatpush1.msra.mxu0 0.0
    %1268 = vmatprep.subr.mxu0 0.0
    %1269 = vmatpush1.msra.mxu0 0.0
    %1270 = vmatprep.subr.mxu0 0.0
    %1271 = vmatpush1.msra.mxu0 0.0
    %1272 = vmatprep.subr.mxu0 0.0
    %1273 = vmatpush1.msra.mxu0 0.0
    %1274 = vmatprep.subr.mxu0 0.0
    %1275 = vmatpush1.msra.mxu0 0.0
    %1276 = vmatprep.mubr.f32.mxu0 0.0
    %1277 = vmatmul.mubr.f32.gmra.mrb[0].mxu0 %v1210
    %v1278 = vpop.f32.mrb[0].mxu0
    %v1279 = vadd.f32 0.0, %v1278
    %v1280 = vpop.f32.mrb[0].mxu0
    %1281 = vdwg.mxu0
    %v1283 = vsel %vm383, %v712, 0
    %1285 = vmatprep.subr.mxu0 0.0
    %1286 = vmatpush1.msra.mxu0 %v379
    %1287 = vmatprep.subr.mxu0 0.0
    %1288 = vmatpush1.msra.mxu0 0.0
    %1289 = vmatprep.subr.mxu0 0.0
    %1290 = vmatpush1.msra.mxu0 0.0
    %1291 = vmatprep.subr.mxu0 0.0
    %1292 = vmatpush1.msra.mxu0 0.0
    %1293 = vmatprep.subr.mxu0 0.0
    %1294 = vmatpush1.msra.mxu0 0.0
    %1295 = vmatprep.subr.mxu0 0.0
    %1296 = vmatpush1.msra.mxu0 0.0
    %1297 = vmatprep.subr.mxu0 0.0
    %1298 = vmatpush1.msra.mxu0 0.0
    %1299 = vmatprep.subr.mxu0 0.0
    %1300 = vmatpush1.msra.mxu0 0.0
    %1301 = vmatprep.subr.mxu0 0.0
    %1302 = vmatpush1.msra.mxu0 0.0
    %1303 = vmatprep.subr.mxu0 0.0
    %1304 = vmatpush1.msra.mxu0 0.0
    %1305 = vmatprep.subr.mxu0 0.0
    %1306 = vmatpush1.msra.mxu0 0.0
    %1307 = vmatprep.subr.mxu0 0.0
    %1308 = vmatpush1.msra.mxu0 0.0
    %1309 = vmatprep.subr.mxu0 0.0
    %1310 = vmatpush1.msra.mxu0 0.0
    %1311 = vmatprep.subr.mxu0 0.0
    %1312 = vmatpush1.msra.mxu0 0.0
    %1313 = vmatprep.subr.mxu0 0.0
    %1314 = vmatpush1.msra.mxu0 0.0
    %1315 = vmatprep.subr.mxu0 0.0
    %1316 = vmatpush1.msra.mxu0 0.0
    %1317 = vmatprep.subr.mxu0 0.0
    %1318 = vmatpush1.msra.mxu0 0.0
    %1319 = vmatprep.subr.mxu0 0.0
    %1320 = vmatpush1.msra.mxu0 0.0
    %1321 = vmatprep.subr.mxu0 0.0
    %1322 = vmatpush1.msra.mxu0 0.0
    %1323 = vmatprep.subr.mxu0 0.0
    %1324 = vmatpush1.msra.mxu0 0.0
    %1325 = vmatprep.subr.mxu0 0.0
    %1326 = vmatpush1.msra.mxu0 0.0
    %1327 = vmatprep.subr.mxu0 0.0
    %1328 = vmatpush1.msra.mxu0 0.0
    %1329 = vmatprep.subr.mxu0 0.0
    %1330 = vmatpush1.msra.mxu0 0.0
    %1331 = vmatprep.subr.mxu0 0.0
    %1332 = vmatpush1.msra.mxu0 0.0
    %1333 = vmatprep.subr.mxu0 0.0
    %1334 = vmatpush1.msra.mxu0 0.0
    %1335 = vmatprep.subr.mxu0 0.0
    %1336 = vmatpush1.msra.mxu0 0.0
    %1337 = vmatprep.subr.mxu0 0.0
    %1338 = vmatpush1.msra.mxu0 0.0
    %1339 = vmatprep.subr.mxu0 0.0
    %1340 = vmatpush1.msra.mxu0 0.0
    %1341 = vmatprep.subr.mxu0 0.0
    %1342 = vmatpush1.msra.mxu0 0.0
    %1343 = vmatprep.subr.mxu0 0.0
    %1344 = vmatpush1.msra.mxu0 0.0
    %1345 = vmatprep.subr.mxu0 0.0
    %1346 = vmatpush1.msra.mxu0 0.0
    %1347 = vmatprep.subr.mxu0 0.0
    %1348 = vmatpush1.msra.mxu0 0.0
    %1349 = vmatprep.mubr.f32.mxu0 0.0
    %1350 = vmatmul.mubr.f32.gmra.mrb[0].mxu0 %v1283
    %v1351 = vpop.f32.mrb[0].mxu0
    %v1352 = vadd.f32 %v1279, %v1351
    %v1353 = vpop.f32.mrb[0].mxu0
    %1354 = vdwg.mxu0
    %1355 = vrot.lane.b32.xlu0 %v170, 112
    %v1356 = vpop.permute.xlu0 %1355
    %1357 = vrot.lane.b32.xlu0 %v266, 112
    %v1358 = vpop.permute.xlu0 %1357
    %1359 = vrot.lane.b32.xlu0 %v271, 112
    %v1360 = vpop.permute.xlu0 %1359
    %v1361 = vsel %vm383, %v1356, 0
    %v1363 = vsel %vm383, %v1358, 0
    %v1365 = vsel %vm383, %v1360, 0
    %1367 = vmatprep.subr.mxu0 0.0
    %1368 = vmatpush1.xpose.msra.mxu0 %v1363
    %1369 = vmatprep.subr.mxu0 0.0
    %1370 = vmatpush1.xpose.msra.mxu0 %v1365
    %1371 = vmatprep.subr.mxu0 0.0
    %1372 = vmatpush1.xpose.msra.mxu0 0.0
    %1373 = vmatprep.subr.mxu0 0.0
    %1374 = vmatpush1.xpose.msra.mxu0 0.0
    %1375 = vmatprep.subr.mxu0 0.0
    %1376 = vmatpush1.xpose.msra.mxu0 0.0
    %1377 = vmatprep.subr.mxu0 0.0
    %1378 = vmatpush1.xpose.msra.mxu0 0.0
    %1379 = vmatprep.subr.mxu0 0.0
    %1380 = vmatpush1.xpose.msra.mxu0 0.0
    %1381 = vmatprep.subr.mxu0 0.0
    %1382 = vmatpush1.xpose.msra.mxu0 0.0
    %1383 = vmatprep.subr.mxu0 0.0
    %1384 = vmatpush1.xpose.msra.mxu0 0.0
    %1385 = vmatprep.subr.mxu0 0.0
    %1386 = vmatpush1.xpose.msra.mxu0 0.0
    %1387 = vmatprep.subr.mxu0 0.0
    %1388 = vmatpush1.xpose.msra.mxu0 0.0
    %1389 = vmatprep.subr.mxu0 0.0
    %1390 = vmatpush1.xpose.msra.mxu0 0.0
    %1391 = vmatprep.subr.mxu0 0.0
    %1392 = vmatpush1.xpose.msra.mxu0 0.0
    %1393 = vmatprep.subr.mxu0 0.0
    %1394 = vmatpush1.xpose.msra.mxu0 0.0
    %1395 = vmatprep.subr.mxu0 0.0
    %1396 = vmatpush1.xpose.msra.mxu0 0.0
    %1397 = vmatprep.subr.mxu0 0.0
    %1398 = vmatpush1.xpose.msra.mxu0 0.0
    %1399 = vmatprep.subr.mxu0 0.0
    %1400 = vmatpush1.xpose.msra.mxu0 0.0
    %1401 = vmatprep.subr.mxu0 0.0
    %1402 = vmatpush1.xpose.msra.mxu0 0.0
    %1403 = vmatprep.subr.mxu0 0.0
    %1404 = vmatpush1.xpose.msra.mxu0 0.0
    %1405 = vmatprep.subr.mxu0 0.0
    %1406 = vmatpush1.xpose.msra.mxu0 0.0
    %1407 = vmatprep.subr.mxu0 0.0
    %1408 = vmatpush1.xpose.msra.mxu0 0.0
    %1409 = vmatprep.subr.mxu0 0.0
    %1410 = vmatpush1.xpose.msra.mxu0 0.0
    %1411 = vmatprep.subr.mxu0 0.0
    %1412 = vmatpush1.xpose.msra.mxu0 0.0
    %1413 = vmatprep.subr.mxu0 0.0
    %1414 = vmatpush1.xpose.msra.mxu0 0.0
    %1415 = vmatprep.subr.mxu0 0.0
    %1416 = vmatpush1.xpose.msra.mxu0 0.0
    %1417 = vmatprep.subr.mxu0 0.0
    %1418 = vmatpush1.xpose.msra.mxu0 0.0
    %1419 = vmatprep.subr.mxu0 0.0
    %1420 = vmatpush1.xpose.msra.mxu0 0.0
    %1421 = vmatprep.subr.mxu0 0.0
    %1422 = vmatpush1.xpose.msra.mxu0 0.0
    %1423 = vmatprep.subr.mxu0 0.0
    %1424 = vmatpush1.xpose.msra.mxu0 0.0
    %1425 = vmatprep.subr.mxu0 0.0
    %1426 = vmatpush1.xpose.msra.mxu0 0.0
    %1427 = vmatprep.subr.mxu0 0.0
    %1428 = vmatpush1.xpose.msra.mxu0 0.0
    %1429 = vmatprep.subr.mxu0 0.0
    %1430 = vmatpush1.xpose.msra.mxu0 0.0
    %1431 = vmatprep.mubr.f32.mxu0 0.0
    %1432 = vmatmul.mubr.f32.gmra.mrb[0].mxu0 %v1361
    %v1433 = vpop.f32.mrb[0].mxu0
    %v1434 = vadd.f32 0.0, %v1433
    %v1435 = vpop.f32.mrb[0].mxu0
    %1436 = vdwg.mxu0
    %v1437 = vmul.f32 %v1434, 0.35355338
    %v1438 = vsel %vm464, %v1437, -inf
    %1439 = vmax.xlane.f32.xlu0 %v1438
    %v1440 = vpop.xlane.xlu0 %1439
    %v1441 = vsub.f32 %v1437, %v1440
    %v1442 = vmul.f32 %v1441, 1.442695
    %v1443 = vpow.pop %v1442
    %1444 = vrot.lane.b32.xlu0 %v360, 112
    %v1445 = vpop.permute.xlu0 %1444
    %1446 = vrot.lane.b32.xlu0 %v365, 112
    %v1447 = vpop.permute.xlu0 %1446
    %v1451 = vsel %vm464, %v1443, 0
    %1453 = vmatprep.subr.mxu0 0.0
    %1454 = vmatpush1.msra.mxu0 %v1445
    %1455 = vmatprep.subr.mxu0 0.0
    %1456 = vmatpush1.msra.mxu0 %v1447
    %1457 = vmatprep.subr.mxu0 0.0
    %1458 = vmatpush1.msra.mxu0 0.0
    %1459 = vmatprep.subr.mxu0 0.0
    %1460 = vmatpush1.msra.mxu0 0.0
    %1461 = vmatprep.subr.mxu0 0.0
    %1462 = vmatpush1.msra.mxu0 0.0
    %1463 = vmatprep.subr.mxu0 0.0
    %1464 = vmatpush1.msra.mxu0 0.0
    %1465 = vmatprep.subr.mxu0 0.0
    %1466 = vmatpush1.msra.mxu0 0.0
    %1467 = vmatprep.subr.mxu0 0.0
    %1468 = vmatpush1.msra.mxu0 0.0
    %1469 = vmatprep.subr.mxu0 0.0
    %1470 = vmatpush1.msra.mxu0 0.0
    %1471 = vmatprep.subr.mxu0 0.0
    %1472 = vmatpush1.msra.mxu0 0.0
    %1473 = vmatprep.subr.mxu0 0.0
    %1474 = vmatpush1.msra.mxu0 0.0
    %1475 = vmatprep.subr.mxu0 0.0
    %1476 = vmatpush1.msra.mxu0 0.0
    %1477 = vmatprep.subr.mxu0 0.0
    %1478 = vmatpush1.msra.mxu0 0.0
    %1479 = vmatprep.subr.mxu0 0.0
    %1480 = vmatpush1.msra.mxu0 0.0
    %1481 = vmatprep.subr.mxu0 0.0
    %1482 = vmatpush1.msra.mxu0 0.0
    %1483 = vmatprep.subr.mxu0 0.0
    %1484 = vmatpush1.msra.mxu0 0.0
    %1485 = vmatprep.subr.mxu0 0.0
    %1486 = vmatpush1.msra.mxu0 0.0
    %1487 = vmatprep.subr.mxu0 0.0
    %1488 = vmatpush1.msra.mxu0 0.0
    %1489 = vmatprep.subr.mxu0 0.0
    %1490 = vmatpush1.msra.mxu0 0.0
    %1491 = vmatprep.subr.mxu0 0.0
    %1492 = vmatpush1.msra.mxu0 0.0
    %1493 = vmatprep.subr.mxu0 0.0
    %1494 = vmatpush1.msra.mxu0 0.0
    %1495 = vmatprep.subr.mxu0 0.0
    %1496 = vmatpush1.msra.mxu0 0.0
    %1497 = vmatprep.subr.mxu0 0.0
    %1498 = vmatpush1.msra.mxu0 0.0
    %1499 = vmatprep.subr.mxu0 0.0
    %1500 = vmatpush1.msra.mxu0 0.0
    %1501 = vmatprep.subr.mxu0 0.0
    %1502 = vmatpush1.msra.mxu0 0.0
    %1503 = vmatprep.subr.mxu0 0.0
    %1504 = vmatpush1.msra.mxu0 0.0
    %1505 = vmatprep.subr.mxu0 0.0
    %1506 = vmatpush1.msra.mxu0 0.0
    %1507 = vmatprep.subr.mxu0 0.0
    %1508 = vmatpush1.msra.mxu0 0.0
    %1509 = vmatprep.subr.mxu0 0.0
    %1510 = vmatpush1.msra.mxu0 0.0
    %1511 = vmatprep.subr.mxu0 0.0
    %1512 = vmatpush1.msra.mxu0 0.0
    %1513 = vmatprep.subr.mxu0 0.0
    %1514 = vmatpush1.msra.mxu0 0.0
    %1515 = vmatprep.subr.mxu0 0.0
    %1516 = vmatpush1.msra.mxu0 0.0
    %1517 = vmatprep.mubr.f32.mxu0 0.0
    %1518 = vmatmul.mubr.f32.gmra.mrb[0].mxu0 %v1451
    %v1519 = vpop.f32.mrb[0].mxu0
    %v1520 = vadd.f32 0.0, %v1519
    %v1521 = vpop.f32.mrb[0].mxu0
    %1522 = vdwg.mxu0
    %v1523 = vsel %vm464, %v1443, 0.0
    %1524 = vadd.xlane.f32.xlu0 %v1523
    %v1525 = vpop.xlane.xlu0 %1524
    %v1526 = vrcp.pop %v1525
    %v1527 = vmul.f32 %v1520, %v1526
    %v1529 = vsel %vm383, %v1527, 0
    %1531 = vmatprep.subr.mxu0 0.0
    %1532 = vmatpush1.msra.mxu0 %v381
    %1533 = vmatprep.subr.mxu0 0.0
    %1534 = vmatpush1.msra.mxu0 0.0
    %1535 = vmatprep.subr.mxu0 0.0
    %1536 = vmatpush1.msra.mxu0 0.0
    %1537 = vmatprep.subr.mxu0 0.0
    %1538 = vmatpush1.msra.mxu0 0.0
    %1539 = vmatprep.subr.mxu0 0.0
    %1540 = vmatpush1.msra.mxu0 0.0
    %1541 = vmatprep.subr.mxu0 0.0
    %1542 = vmatpush1.msra.mxu0 0.0
    %1543 = vmatprep.subr.mxu0 0.0
    %1544 = vmatpush1.msra.mxu0 0.0
    %1545 = vmatprep.subr.mxu0 0.0
    %1546 = vmatpush1.msra.mxu0 0.0
    %1547 = vmatprep.subr.mxu0 0.0
    %1548 = vmatpush1.msra.mxu0 0.0
    %1549 = vmatprep.subr.mxu0 0.0
    %1550 = vmatpush1.msra.mxu0 0.0
    %1551 = vmatprep.subr.mxu0 0.0
    %1552 = vmatpush1.msra.mxu0 0.0
    %1553 = vmatprep.subr.mxu0 0.0
    %1554 = vmatpush1.msra.mxu0 0.0
    %1555 = vmatprep.subr.mxu0 0.0
    %1556 = vmatpush1.msra.mxu0 0.0
    %1557 = vmatprep.subr.mxu0 0.0
    %1558 = vmatpush1.msra.mxu0 0.0
    %1559 = vmatprep.subr.mxu0 0.0
    %1560 = vmatpush1.msra.mxu0 0.0
    %1561 = vmatprep.subr.mxu0 0.0
    %1562 = vmatpush1.msra.mxu0 0.0
    %1563 = vmatprep.subr.mxu0 0.0
    %1564 = vmatpush1.msra.mxu0 0.0
    %1565 = vmatprep.subr.mxu0 0.0
    %1566 = vmatpush1.msra.mxu0 0.0
    %1567 = vmatprep.subr.mxu0 0.0
    %1568 = vmatpush1.msra.mxu0 0.0
    %1569 = vmatprep.subr.mxu0 0.0
    %1570 = vmatpush1.msra.mxu0 0.0
    %1571 = vmatprep.subr.mxu0 0.0
    %1572 = vmatpush1.msra.mxu0 0.0
    %1573 = vmatprep.subr.mxu0 0.0
    %1574 = vmatpush1.msra.mxu0 0.0
    %1575 = vmatprep.subr.mxu0 0.0
    %1576 = vmatpush1.msra.mxu0 0.0
    %1577 = vmatprep.subr.mxu0 0.0
    %1578 = vmatpush1.msra.mxu0 0.0
    %1579 = vmatprep.subr.mxu0 0.0
    %1580 = vmatpush1.msra.mxu0 0.0
    %1581 = vmatprep.subr.mxu0 0.0
    %1582 = vmatpush1.msra.mxu0 0.0
    %1583 = vmatprep.subr.mxu0 0.0
    %1584 = vmatpush1.msra.mxu0 0.0
    %1585 = vmatprep.subr.mxu0 0.0
    %1586 = vmatpush1.msra.mxu0 0.0
    %1587 = vmatprep.subr.mxu0 0.0
    %1588 = vmatpush1.msra.mxu0 0.0
    %1589 = vmatprep.subr.mxu0 0.0
    %1590 = vmatpush1.msra.mxu0 0.0
    %1591 = vmatprep.subr.mxu0 0.0
    %1592 = vmatpush1.msra.mxu0 0.0
    %1593 = vmatprep.subr.mxu0 0.0
    %1594 = vmatpush1.msra.mxu0 0.0
    %1595 = vmatprep.mubr.f32.mxu0 0.0
    %1596 = vmatmul.mubr.f32.gmra.mrb[0].mxu0 %v1529
    %v1597 = vpop.f32.mrb[0].mxu0
    %v1598 = vadd.f32 0.0, %v1597
    %v1599 = vpop.f32.mrb[0].mxu0
    %1600 = vdwg.mxu0
    %v1601 = vadd.f32 %v1031, %v1598
    %1602 = vrot.lane.b32.xlu0 %v175, 112
    %v1603 = vpop.permute.xlu0 %1602
    %1604 = vrot.lane.b32.xlu0 %v276, 112
    %v1605 = vpop.permute.xlu0 %1604
    %1606 = vrot.lane.b32.xlu0 %v281, 112
    %v1607 = vpop.permute.xlu0 %1606
    %v1608 = vsel %vm383, %v1603, 0
    %v1610 = vsel %vm383, %v1605, 0
    %v1612 = vsel %vm383, %v1607, 0
    %1614 = vmatprep.subr.mxu0 0.0
    %1615 = vmatpush1.xpose.msra.mxu0 %v1610
    %1616 = vmatprep.subr.mxu0 0.0
    %1617 = vmatpush1.xpose.msra.mxu0 %v1612
    %1618 = vmatprep.subr.mxu0 0.0
    %1619 = vmatpush1.xpose.msra.mxu0 0.0
    %1620 = vmatprep.subr.mxu0 0.0
    %1621 = vmatpush1.xpose.msra.mxu0 0.0
    %1622 = vmatprep.subr.mxu0 0.0
    %1623 = vmatpush1.xpose.msra.mxu0 0.0
    %1624 = vmatprep.subr.mxu0 0.0
    %1625 = vmatpush1.xpose.msra.mxu0 0.0
    %1626 = vmatprep.subr.mxu0 0.0
    %1627 = vmatpush1.xpose.msra.mxu0 0.0
    %1628 = vmatprep.subr.mxu0 0.0
    %1629 = vmatpush1.xpose.msra.mxu0 0.0
    %1630 = vmatprep.subr.mxu0 0.0
    %1631 = vmatpush1.xpose.msra.mxu0 0.0
    %1632 = vmatprep.subr.mxu0 0.0
    %1633 = vmatpush1.xpose.msra.mxu0 0.0
    %1634 = vmatprep.subr.mxu0 0.0
    %1635 = vmatpush1.xpose.msra.mxu0 0.0
    %1636 = vmatprep.subr.mxu0 0.0
    %1637 = vmatpush1.xpose.msra.mxu0 0.0
    %1638 = vmatprep.subr.mxu0 0.0
    %1639 = vmatpush1.xpose.msra.mxu0 0.0
    %1640 = vmatprep.subr.mxu0 0.0
    %1641 = vmatpush1.xpose.msra.mxu0 0.0
    %1642 = vmatprep.subr.mxu0 0.0
    %1643 = vmatpush1.xpose.msra.mxu0 0.0
    %1644 = vmatprep.subr.mxu0 0.0
    %1645 = vmatpush1.xpose.msra.mxu0 0.0
    %1646 = vmatprep.subr.mxu0 0.0
    %1647 = vmatpush1.xpose.msra.mxu0 0.0
    %1648 = vmatprep.subr.mxu0 0.0
    %1649 = vmatpush1.xpose.msra.mxu0 0.0
    %1650 = vmatprep.subr.mxu0 0.0
    %1651 = vmatpush1.xpose.msra.mxu0 0.0
    %1652 = vmatprep.subr.mxu0 0.0
    %1653 = vmatpush1.xpose.msra.mxu0 0.0
    %1654 = vmatprep.subr.mxu0 0.0
    %1655 = vmatpush1.xpose.msra.mxu0 0.0
    %1656 = vmatprep.subr.mxu0 0.0
    %1657 = vmatpush1.xpose.msra.mxu0 0.0
    %1658 = vmatprep.subr.mxu0 0.0
    %1659 = vmatpush1.xpose.msra.mxu0 0.0
    %1660 = vmatprep.subr.mxu0 0.0
    %1661 = vmatpush1.xpose.msra.mxu0 0.0
    %1662 = vmatprep.subr.mxu0 0.0
    %1663 = vmatpush1.xpose.msra.mxu0 0.0
    %1664 = vmatprep.subr.mxu0 0.0
    %1665 = vmatpush1.xpose.msra.mxu0 0.0
    %1666 = vmatprep.subr.mxu0 0.0
    %1667 = vmatpush1.xpose.msra.mxu0 0.0
    %1668 = vmatprep.subr.mxu0 0.0
    %1669 = vmatpush1.xpose.msra.mxu0 0.0
    %1670 = vmatprep.subr.mxu0 0.0
    %1671 = vmatpush1.xpose.msra.mxu0 0.0
    %1672 = vmatprep.subr.mxu0 0.0
    %1673 = vmatpush1.xpose.msra.mxu0 0.0
    %1674 = vmatprep.subr.mxu0 0.0
    %1675 = vmatpush1.xpose.msra.mxu0 0.0
    %1676 = vmatprep.subr.mxu0 0.0
    %1677 = vmatpush1.xpose.msra.mxu0 0.0
    %1678 = vmatprep.mubr.f32.mxu0 0.0
    %1679 = vmatmul.mubr.f32.gmra.mrb[0].mxu0 %v1608
    %v1680 = vpop.f32.mrb[0].mxu0
    %v1681 = vadd.f32 0.0, %v1680
    %v1682 = vpop.f32.mrb[0].mxu0
    %1683 = vdwg.mxu0
    %v1684 = vmul.f32 %v1681, 0.35355338
    %v1685 = vsel %vm464, %v1684, -inf
    %1686 = vmax.xlane.f32.xlu0 %v1685
    %v1687 = vpop.xlane.xlu0 %1686
    %v1688 = vsub.f32 %v1684, %v1687
    %v1689 = vmul.f32 %v1688, 1.442695
    %v1690 = vpow.pop %v1689
    %1691 = vrot.lane.b32.xlu0 %v370, 112
    %v1692 = vpop.permute.xlu0 %1691
    %1693 = vrot.lane.b32.xlu0 %v375, 112
    %v1694 = vpop.permute.xlu0 %1693
    %v1698 = vsel %vm464, %v1690, 0
    %1700 = vmatprep.subr.mxu0 0.0
    %1701 = vmatpush1.msra.mxu0 %v1692
    %1702 = vmatprep.subr.mxu0 0.0
    %1703 = vmatpush1.msra.mxu0 %v1694
    %1704 = vmatprep.subr.mxu0 0.0
    %1705 = vmatpush1.msra.mxu0 0.0
    %1706 = vmatprep.subr.mxu0 0.0
    %1707 = vmatpush1.msra.mxu0 0.0
    %1708 = vmatprep.subr.mxu0 0.0
    %1709 = vmatpush1.msra.mxu0 0.0
    %1710 = vmatprep.subr.mxu0 0.0
    %1711 = vmatpush1.msra.mxu0 0.0
    %1712 = vmatprep.subr.mxu0 0.0
    %1713 = vmatpush1.msra.mxu0 0.0
    %1714 = vmatprep.subr.mxu0 0.0
    %1715 = vmatpush1.msra.mxu0 0.0
    %1716 = vmatprep.subr.mxu0 0.0
    %1717 = vmatpush1.msra.mxu0 0.0
    %1718 = vmatprep.subr.mxu0 0.0
    %1719 = vmatpush1.msra.mxu0 0.0
    %1720 = vmatprep.subr.mxu0 0.0
    %1721 = vmatpush1.msra.mxu0 0.0
    %1722 = vmatprep.subr.mxu0 0.0
    %1723 = vmatpush1.msra.mxu0 0.0
    %1724 = vmatprep.subr.mxu0 0.0
    %1725 = vmatpush1.msra.mxu0 0.0
    %1726 = vmatprep.subr.mxu0 0.0
    %1727 = vmatpush1.msra.mxu0 0.0
    %1728 = vmatprep.subr.mxu0 0.0
    %1729 = vmatpush1.msra.mxu0 0.0
    %1730 = vmatprep.subr.mxu0 0.0
    %1731 = vmatpush1.msra.mxu0 0.0
    %1732 = vmatprep.subr.mxu0 0.0
    %1733 = vmatpush1.msra.mxu0 0.0
    %1734 = vmatprep.subr.mxu0 0.0
    %1735 = vmatpush1.msra.mxu0 0.0
    %1736 = vmatprep.subr.mxu0 0.0
    %1737 = vmatpush1.msra.mxu0 0.0
    %1738 = vmatprep.subr.mxu0 0.0
    %1739 = vmatpush1.msra.mxu0 0.0
    %1740 = vmatprep.subr.mxu0 0.0
    %1741 = vmatpush1.msra.mxu0 0.0
    %1742 = vmatprep.subr.mxu0 0.0
    %1743 = vmatpush1.msra.mxu0 0.0
    %1744 = vmatprep.subr.mxu0 0.0
    %1745 = vmatpush1.msra.mxu0 0.0
    %1746 = vmatprep.subr.mxu0 0.0
    %1747 = vmatpush1.msra.mxu0 0.0
    %1748 = vmatprep.subr.mxu0 0.0
    %1749 = vmatpush1.msra.mxu0 0.0
    %1750 = vmatprep.subr.mxu0 0.0
    %1751 = vmatpush1.msra.mxu0 0.0
    %1752 = vmatprep.subr.mxu0 0.0
    %1753 = vmatpush1.msra.mxu0 0.0
    %1754 = vmatprep.subr.mxu0 0.0
    %1755 = vmatpush1.msra.mxu0 0.0
    %1756 = vmatprep.subr.mxu0 0.0
    %1757 = vmatpush1.msra.mxu0 0.0
    %1758 = vmatprep.subr.mxu0 0.0
    %1759 = vmatpush1.msra.mxu0 0.0
    %1760 = vmatprep.subr.mxu0 0.0
    %1761 = vmatpush1.msra.mxu0 0.0
    %1762 = vmatprep.subr.mxu0 0.0
    %1763 = vmatpush1.msra.mxu0 0.0
    %1764 = vmatprep.mubr.f32.mxu0 0.0
    %1765 = vmatmul.mubr.f32.gmra.mrb[0].mxu0 %v1698
    %v1766 = vpop.f32.mrb[0].mxu0
    %v1767 = vadd.f32 0.0, %v1766
    %v1768 = vpop.f32.mrb[0].mxu0
    %1769 = vdwg.mxu0
    %v1770 = vsel %vm464, %v1690, 0.0
    %1771 = vadd.xlane.f32.xlu0 %v1770
    %v1772 = vpop.xlane.xlu0 %1771
    %v1773 = vrcp.pop %v1772
    %v1774 = vmul.f32 %v1767, %v1773
    %v1776 = vsel %vm383, %v1774, 0
    %1778 = vmatprep.subr.mxu0 0.0
    %1779 = vmatpush1.msra.mxu0 %v381
    %1780 = vmatprep.subr.mxu0 0.0
    %1781 = vmatpush1.msra.mxu0 0.0
    %1782 = vmatprep.subr.mxu0 0.0
    %1783 = vmatpush1.msra.mxu0 0.0
    %1784 = vmatprep.subr.mxu0 0.0
    %1785 = vmatpush1.msra.mxu0 0.0
    %1786 = vmatprep.subr.mxu0 0.0
    %1787 = vmatpush1.msra.mxu0 0.0
    %1788 = vmatprep.subr.mxu0 0.0
    %1789 = vmatpush1.msra.mxu0 0.0
    %1790 = vmatprep.subr.mxu0 0.0
    %1791 = vmatpush1.msra.mxu0 0.0
    %1792 = vmatprep.subr.mxu0 0.0
    %1793 = vmatpush1.msra.mxu0 0.0
    %1794 = vmatprep.subr.mxu0 0.0
    %1795 = vmatpush1.msra.mxu0 0.0
    %1796 = vmatprep.subr.mxu0 0.0
    %1797 = vmatpush1.msra.mxu0 0.0
    %1798 = vmatprep.subr.mxu0 0.0
    %1799 = vmatpush1.msra.mxu0 0.0
    %1800 = vmatprep.subr.mxu0 0.0
    %1801 = vmatpush1.msra.mxu0 0.0
    %1802 = vmatprep.subr.mxu0 0.0
    %1803 = vmatpush1.msra.mxu0 0.0
    %1804 = vmatprep.subr.mxu0 0.0
    %1805 = vmatpush1.msra.mxu0 0.0
    %1806 = vmatprep.subr.mxu0 0.0
    %1807 = vmatpush1.msra.mxu0 0.0
    %1808 = vmatprep.subr.mxu0 0.0
    %1809 = vmatpush1.msra.mxu0 0.0
    %1810 = vmatprep.subr.mxu0 0.0
    %1811 = vmatpush1.msra.mxu0 0.0
    %1812 = vmatprep.subr.mxu0 0.0
    %1813 = vmatpush1.msra.mxu0 0.0
    %1814 = vmatprep.subr.mxu0 0.0
    %1815 = vmatpush1.msra.mxu0 0.0
    %1816 = vmatprep.subr.mxu0 0.0
    %1817 = vmatpush1.msra.mxu0 0.0
    %1818 = vmatprep.subr.mxu0 0.0
    %1819 = vmatpush1.msra.mxu0 0.0
    %1820 = vmatprep.subr.mxu0 0.0
    %1821 = vmatpush1.msra.mxu0 0.0
    %1822 = vmatprep.subr.mxu0 0.0
    %1823 = vmatpush1.msra.mxu0 0.0
    %1824 = vmatprep.subr.mxu0 0.0
    %1825 = vmatpush1.msra.mxu0 0.0
    %1826 = vmatprep.subr.mxu0 0.0
    %1827 = vmatpush1.msra.mxu0 0.0
    %1828 = vmatprep.subr.mxu0 0.0
    %1829 = vmatpush1.msra.mxu0 0.0
    %1830 = vmatprep.subr.mxu0 0.0
    %1831 = vmatpush1.msra.mxu0 0.0
    %1832 = vmatprep.subr.mxu0 0.0
    %1833 = vmatpush1.msra.mxu0 0.0
    %1834 = vmatprep.subr.mxu0 0.0
    %1835 = vmatpush1.msra.mxu0 0.0
    %1836 = vmatprep.subr.mxu0 0.0
    %1837 = vmatpush1.msra.mxu0 0.0
    %1838 = vmatprep.subr.mxu0 0.0
    %1839 = vmatpush1.msra.mxu0 0.0
    %1840 = vmatprep.subr.mxu0 0.0
    %1841 = vmatpush1.msra.mxu0 0.0
    %1842 = vmatprep.mubr.f32.mxu0 0.0
    %1843 = vmatmul.mubr.f32.gmra.mrb[0].mxu0 %v1776
    %v1844 = vpop.f32.mrb[0].mxu0
    %v1845 = vadd.f32 0.0, %v1844
    %v1846 = vpop.f32.mrb[0].mxu0
    %1847 = vdwg.mxu0
    %v1848 = vadd.f32 %v1352, %v1845
    %1849 = vrot.lane.b32.xlu0 %v170, 104
    %v1850 = vpop.permute.xlu0 %1849
    %1851 = vrot.lane.b32.xlu0 %v266, 104
    %v1852 = vpop.permute.xlu0 %1851
    %1853 = vrot.lane.b32.xlu0 %v271, 104
    %v1854 = vpop.permute.xlu0 %1853
    %v1855 = vsel %vm383, %v1850, 0
    %v1857 = vsel %vm383, %v1852, 0
    %v1859 = vsel %vm383, %v1854, 0
    %1861 = vmatprep.subr.mxu0 0.0
    %1862 = vmatpush1.xpose.msra.mxu0 %v1857
    %1863 = vmatprep.subr.mxu0 0.0
    %1864 = vmatpush1.xpose.msra.mxu0 %v1859
    %1865 = vmatprep.subr.mxu0 0.0
    %1866 = vmatpush1.xpose.msra.mxu0 0.0
    %1867 = vmatprep.subr.mxu0 0.0
    %1868 = vmatpush1.xpose.msra.mxu0 0.0
    %1869 = vmatprep.subr.mxu0 0.0
    %1870 = vmatpush1.xpose.msra.mxu0 0.0
    %1871 = vmatprep.subr.mxu0 0.0
    %1872 = vmatpush1.xpose.msra.mxu0 0.0
    %1873 = vmatprep.subr.mxu0 0.0
    %1874 = vmatpush1.xpose.msra.mxu0 0.0
    %1875 = vmatprep.subr.mxu0 0.0
    %1876 = vmatpush1.xpose.msra.mxu0 0.0
    %1877 = vmatprep.subr.mxu0 0.0
    %1878 = vmatpush1.xpose.msra.mxu0 0.0
    %1879 = vmatprep.subr.mxu0 0.0
    %1880 = vmatpush1.xpose.msra.mxu0 0.0
    %1881 = vmatprep.subr.mxu0 0.0
    %1882 = vmatpush1.xpose.msra.mxu0 0.0
    %1883 = vmatprep.subr.mxu0 0.0
    %1884 = vmatpush1.xpose.msra.mxu0 0.0
    %1885 = vmatprep.subr.mxu0 0.0
    %1886 = vmatpush1.xpose.msra.mxu0 0.0
    %1887 = vmatprep.subr.mxu0 0.0
    %1888 = vmatpush1.xpose.msra.mxu0 0.0
    %1889 = vmatprep.subr.mxu0 0.0
    %1890 = vmatpush1.xpose.msra.mxu0 0.0
    %1891 = vmatprep.subr.mxu0 0.0
    %1892 = vmatpush1.xpose.msra.mxu0 0.0
    %1893 = vmatprep.subr.mxu0 0.0
    %1894 = vmatpush1.xpose.msra.mxu0 0.0
    %1895 = vmatprep.subr.mxu0 0.0
    %1896 = vmatpush1.xpose.msra.mxu0 0.0
    %1897 = vmatprep.subr.mxu0 0.0
    %1898 = vmatpush1.xpose.msra.mxu0 0.0
    %1899 = vmatprep.subr.mxu0 0.0
    %1900 = vmatpush1.xpose.msra.mxu0 0.0
    %1901 = vmatprep.subr.mxu0 0.0
    %1902 = vmatpush1.xpose.msra.mxu0 0.0
    %1903 = vmatprep.subr.mxu0 0.0
    %1904 = vmatpush1.xpose.msra.mxu0 0.0
    %1905 = vmatprep.subr.mxu0 0.0
    %1906 = vmatpush1.xpose.msra.mxu0 0.0
    %1907 = vmatprep.subr.mxu0 0.0
    %1908 = vmatpush1.xpose.msra.mxu0 0.0
    %1909 = vmatprep.subr.mxu0 0.0
    %1910 = vmatpush1.xpose.msra.mxu0 0.0
    %1911 = vmatprep.subr.mxu0 0.0
    %1912 = vmatpush1.xpose.msra.mxu0 0.0
    %1913 = vmatprep.subr.mxu0 0.0
    %1914 = vmatpush1.xpose.msra.mxu0 0.0
    %1915 = vmatprep.subr.mxu0 0.0
    %1916 = vmatpush1.xpose.msra.mxu0 0.0
    %1917 = vmatprep.subr.mxu0 0.0
    %1918 = vmatpush1.xpose.msra.mxu0 0.0
    %1919 = vmatprep.subr.mxu0 0.0
    %1920 = vmatpush1.xpose.msra.mxu0 0.0
    %1921 = vmatprep.subr.mxu0 0.0
    %1922 = vmatpush1.xpose.msra.mxu0 0.0
    %1923 = vmatprep.subr.mxu0 0.0
    %1924 = vmatpush1.xpose.msra.mxu0 0.0
    %1925 = vmatprep.mubr.f32.mxu0 0.0
    %1926 = vmatmul.mubr.f32.gmra.mrb[0].mxu0 %v1855
    %v1927 = vpop.f32.mrb[0].mxu0
    %v1928 = vadd.f32 0.0, %v1927
    %v1929 = vpop.f32.mrb[0].mxu0
    %1930 = vdwg.mxu0
    %v1931 = vmul.f32 %v1928, 0.35355338
    %v1932 = vsel %vm464, %v1931, -inf
    %1933 = vmax.xlane.f32.xlu0 %v1932
    %v1934 = vpop.xlane.xlu0 %1933
    %v1935 = vsub.f32 %v1931, %v1934
    %v1936 = vmul.f32 %v1935, 1.442695
    %v1937 = vpow.pop %v1936
    %1938 = vrot.lane.b32.xlu0 %v360, 104
    %v1939 = vpop.permute.xlu0 %1938
    %1940 = vrot.lane.b32.xlu0 %v365, 104
    %v1941 = vpop.permute.xlu0 %1940
    %v1945 = vsel %vm464, %v1937, 0
    %1947 = vmatprep.subr.mxu0 0.0
    %1948 = vmatpush1.msra.mxu0 %v1939
    %1949 = vmatprep.subr.mxu0 0.0
    %1950 = vmatpush1.msra.mxu0 %v1941
    %1951 = vmatprep.subr.mxu0 0.0
    %1952 = vmatpush1.msra.mxu0 0.0
    %1953 = vmatprep.subr.mxu0 0.0
    %1954 = vmatpush1.msra.mxu0 0.0
    %1955 = vmatprep.subr.mxu0 0.0
    %1956 = vmatpush1.msra.mxu0 0.0
    %1957 = vmatprep.subr.mxu0 0.0
    %1958 = vmatpush1.msra.mxu0 0.0
    %1959 = vmatprep.subr.mxu0 0.0
    %1960 = vmatpush1.msra.mxu0 0.0
    %1961 = vmatprep.subr.mxu0 0.0
    %1962 = vmatpush1.msra.mxu0 0.0
    %1963 = vmatprep.subr.mxu0 0.0
    %1964 = vmatpush1.msra.mxu0 0.0
    %1965 = vmatprep.subr.mxu0 0.0
    %1966 = vmatpush1.msra.mxu0 0.0
    %1967 = vmatprep.subr.mxu0 0.0
    %1968 = vmatpush1.msra.mxu0 0.0
    %1969 = vmatprep.subr.mxu0 0.0
    %1970 = vmatpush1.msra.mxu0 0.0
    %1971 = vmatprep.subr.mxu0 0.0
    %1972 = vmatpush1.msra.mxu0 0.0
    %1973 = vmatprep.subr.mxu0 0.0
    %1974 = vmatpush1.msra.mxu0 0.0
    %1975 = vmatprep.subr.mxu0 0.0
    %1976 = vmatpush1.msra.mxu0 0.0
    %1977 = vmatprep.subr.mxu0 0.0
    %1978 = vmatpush1.msra.mxu0 0.0
    %1979 = vmatprep.subr.mxu0 0.0
    %1980 = vmatpush1.msra.mxu0 0.0
    %1981 = vmatprep.subr.mxu0 0.0
    %1982 = vmatpush1.msra.mxu0 0.0
    %1983 = vmatprep.subr.mxu0 0.0
    %1984 = vmatpush1.msra.mxu0 0.0
    %1985 = vmatprep.subr.mxu0 0.0
    %1986 = vmatpush1.msra.mxu0 0.0
    %1987 = vmatprep.subr.mxu0 0.0
    %1988 = vmatpush1.msra.mxu0 0.0
    %1989 = vmatprep.subr.mxu0 0.0
    %1990 = vmatpush1.msra.mxu0 0.0
    %1991 = vmatprep.subr.mxu0 0.0
    %1992 = vmatpush1.msra.mxu0 0.0
    %1993 = vmatprep.subr.mxu0 0.0
    %1994 = vmatpush1.msra.mxu0 0.0
    %1995 = vmatprep.subr.mxu0 0.0
    %1996 = vmatpush1.msra.mxu0 0.0
    %1997 = vmatprep.subr.mxu0 0.0
    %1998 = vmatpush1.msra.mxu0 0.0
    %1999 = vmatprep.subr.mxu0 0.0
    %2000 = vmatpush1.msra.mxu0 0.0
    %2001 = vmatprep.subr.mxu0 0.0
    %2002 = vmatpush1.msra.mxu0 0.0
    %2003 = vmatprep.subr.mxu0 0.0
    %2004 = vmatpush1.msra.mxu0 0.0
    %2005 = vmatprep.subr.mxu0 0.0
    %2006 = vmatpush1.msra.mxu0 0.0
    %2007 = vmatprep.subr.mxu0 0.0
    %2008 = vmatpush1.msra.mxu0 0.0
    %2009 = vmatprep.subr.mxu0 0.0
    %2010 = vmatpush1.msra.mxu0 0.0
    %2011 = vmatprep.mubr.f32.mxu0 0.0
    %2012 = vmatmul.mubr.f32.gmra.mrb[0].mxu0 %v1945
    %v2013 = vpop.f32.mrb[0].mxu0
    %v2014 = vadd.f32 0.0, %v2013
    %v2015 = vpop.f32.mrb[0].mxu0
    %2016 = vdwg.mxu0
    %v2017 = vsel %vm464, %v1937, 0.0
    %2018 = vadd.xlane.f32.xlu0 %v2017
    %v2019 = vpop.xlane.xlu0 %2018
    %v2020 = vrcp.pop %v2019
    %v2021 = vmul.f32 %v2014, %v2020
    %v2023 = vsel %vm383, %v2021, 0
    %2025 = vmatprep.subr.mxu0 0.0
    %2026 = vmatpush1.msra.mxu0 %v382
    %2027 = vmatprep.subr.mxu0 0.0
    %2028 = vmatpush1.msra.mxu0 0.0
    %2029 = vmatprep.subr.mxu0 0.0
    %2030 = vmatpush1.msra.mxu0 0.0
    %2031 = vmatprep.subr.mxu0 0.0
    %2032 = vmatpush1.msra.mxu0 0.0
    %2033 = vmatprep.subr.mxu0 0.0
    %2034 = vmatpush1.msra.mxu0 0.0
    %2035 = vmatprep.subr.mxu0 0.0
    %2036 = vmatpush1.msra.mxu0 0.0
    %2037 = vmatprep.subr.mxu0 0.0
    %2038 = vmatpush1.msra.mxu0 0.0
    %2039 = vmatprep.subr.mxu0 0.0
    %2040 = vmatpush1.msra.mxu0 0.0
    %2041 = vmatprep.subr.mxu0 0.0
    %2042 = vmatpush1.msra.mxu0 0.0
    %2043 = vmatprep.subr.mxu0 0.0
    %2044 = vmatpush1.msra.mxu0 0.0
    %2045 = vmatprep.subr.mxu0 0.0
    %2046 = vmatpush1.msra.mxu0 0.0
    %2047 = vmatprep.subr.mxu0 0.0
    %2048 = vmatpush1.msra.mxu0 0.0
    %2049 = vmatprep.subr.mxu0 0.0
    %2050 = vmatpush1.msra.mxu0 0.0
    %2051 = vmatprep.subr.mxu0 0.0
    %2052 = vmatpush1.msra.mxu0 0.0
    %2053 = vmatprep.subr.mxu0 0.0
    %2054 = vmatpush1.msra.mxu0 0.0
    %2055 = vmatprep.subr.mxu0 0.0
    %2056 = vmatpush1.msra.mxu0 0.0
    %2057 = vmatprep.subr.mxu0 0.0
    %2058 = vmatpush1.msra.mxu0 0.0
    %2059 = vmatprep.subr.mxu0 0.0
    %2060 = vmatpush1.msra.mxu0 0.0
    %2061 = vmatprep.subr.mxu0 0.0
    %2062 = vmatpush1.msra.mxu0 0.0
    %2063 = vmatprep.subr.mxu0 0.0
    %2064 = vmatpush1.msra.mxu0 0.0
    %2065 = vmatprep.subr.mxu0 0.0
    %2066 = vmatpush1.msra.mxu0 0.0
    %2067 = vmatprep.subr.mxu0 0.0
    %2068 = vmatpush1.msra.mxu0 0.0
    %2069 = vmatprep.subr.mxu0 0.0
    %2070 = vmatpush1.msra.mxu0 0.0
    %2071 = vmatprep.subr.mxu0 0.0
    %2072 = vmatpush1.msra.mxu0 0.0
    %2073 = vmatprep.subr.mxu0 0.0
    %2074 = vmatpush1.msra.mxu0 0.0
    %2075 = vmatprep.subr.mxu0 0.0
    %2076 = vmatpush1.msra.mxu0 0.0
    %2077 = vmatprep.subr.mxu0 0.0
    %2078 = vmatpush1.msra.mxu0 0.0
    %2079 = vmatprep.subr.mxu0 0.0
    %2080 = vmatpush1.msra.mxu0 0.0
    %2081 = vmatprep.subr.mxu0 0.0
    %2082 = vmatpush1.msra.mxu0 0.0
    %2083 = vmatprep.subr.mxu0 0.0
    %2084 = vmatpush1.msra.mxu0 0.0
    %2085 = vmatprep.subr.mxu0 0.0
    %2086 = vmatpush1.msra.mxu0 0.0
    %2087 = vmatprep.subr.mxu0 0.0
    %2088 = vmatpush1.msra.mxu0 0.0
    %2089 = vmatprep.mubr.f32.mxu0 0.0
    %2090 = vmatmul.mubr.f32.gmra.mrb[0].mxu0 %v2023
    %v2091 = vpop.f32.mrb[0].mxu0
    %v2092 = vadd.f32 0.0, %v2091
    %v2093 = vpop.f32.mrb[0].mxu0
    %2094 = vdwg.mxu0
    %v2095 = vadd.f32 %v1601, %v2092
    %2096 = vrot.lane.b32.xlu0 %v175, 104
    %v2097 = vpop.permute.xlu0 %2096
    %2098 = vrot.lane.b32.xlu0 %v276, 104
    %v2099 = vpop.permute.xlu0 %2098
    %2100 = vrot.lane.b32.xlu0 %v281, 104
    %v2101 = vpop.permute.xlu0 %2100
    %v2102 = vsel %vm383, %v2097, 0
    %v2104 = vsel %vm383, %v2099, 0
    %v2106 = vsel %vm383, %v2101, 0
    %2108 = vmatprep.subr.mxu0 0.0
    %2109 = vmatpush1.xpose.msra.mxu0 %v2104
    %2110 = vmatprep.subr.mxu0 0.0
    %2111 = vmatpush1.xpose.msra.mxu0 %v2106
    %2112 = vmatprep.subr.mxu0 0.0
    %2113 = vmatpush1.xpose.msra.mxu0 0.0
    %2114 = vmatprep.subr.mxu0 0.0
    %2115 = vmatpush1.xpose.msra.mxu0 0.0
    %2116 = vmatprep.subr.mxu0 0.0
    %2117 = vmatpush1.xpose.msra.mxu0 0.0
    %2118 = vmatprep.subr.mxu0 0.0
    %2119 = vmatpush1.xpose.msra.mxu0 0.0
    %2120 = vmatprep.subr.mxu0 0.0
    %2121 = vmatpush1.xpose.msra.mxu0 0.0
    %2122 = vmatprep.subr.mxu0 0.0
    %2123 = vmatpush1.xpose.msra.mxu0 0.0
    %2124 = vmatprep.subr.mxu0 0.0
    %2125 = vmatpush1.xpose.msra.mxu0 0.0
    %2126 = vmatprep.subr.mxu0 0.0
    %2127 = vmatpush1.xpose.msra.mxu0 0.0
    %2128 = vmatprep.subr.mxu0 0.0
    %2129 = vmatpush1.xpose.msra.mxu0 0.0
    %2130 = vmatprep.subr.mxu0 0.0
    %2131 = vmatpush1.xpose.msra.mxu0 0.0
    %2132 = vmatprep.subr.mxu0 0.0
    %2133 = vmatpush1.xpose.msra.mxu0 0.0
    %2134 = vmatprep.subr.mxu0 0.0
    %2135 = vmatpush1.xpose.msra.mxu0 0.0
    %2136 = vmatprep.subr.mxu0 0.0
    %2137 = vmatpush1.xpose.msra.mxu0 0.0
    %2138 = vmatprep.subr.mxu0 0.0
    %2139 = vmatpush1.xpose.msra.mxu0 0.0
    %2140 = vmatprep.subr.mxu0 0.0
    %2141 = vmatpush1.xpose.msra.mxu0 0.0
    %2142 = vmatprep.subr.mxu0 0.0
    %2143 = vmatpush1.xpose.msra.mxu0 0.0
    %2144 = vmatprep.subr.mxu0 0.0
    %2145 = vmatpush1.xpose.msra.mxu0 0.0
    %2146 = vmatprep.subr.mxu0 0.0
    %2147 = vmatpush1.xpose.msra.mxu0 0.0
    %2148 = vmatprep.subr.mxu0 0.0
    %2149 = vmatpush1.xpose.msra.mxu0 0.0
    %2150 = vmatprep.subr.mxu0 0.0
    %2151 = vmatpush1.xpose.msra.mxu0 0.0
    %2152 = vmatprep.subr.mxu0 0.0
    %2153 = vmatpush1.xpose.msra.mxu0 0.0
    %2154 = vmatprep.subr.mxu0 0.0
    %2155 = vmatpush1.xpose.msra.mxu0 0.0
    %2156 = vmatprep.subr.mxu0 0.0
    %2157 = vmatpush1.xpose.msra.mxu0 0.0
    %2158 = vmatprep.subr.mxu0 0.0
    %2159 = vmatpush1.xpose.msra.mxu0 0.0
    %2160 = vmatprep.subr.mxu0 0.0
    %2161 = vmatpush1.xpose.msra.mxu0 0.0
    %2162 = vmatprep.subr.mxu0 0.0
    %2163 = vmatpush1.xpose.msra.mxu0 0.0
    %2164 = vmatprep.subr.mxu0 0.0
    %2165 = vmatpush1.xpose.msra.mxu0 0.0
    %2166 = vmatprep.subr.mxu0 0.0
    %2167 = vmatpush1.xpose.msra.mxu0 0.0
    %2168 = vmatprep.subr.mxu0 0.0
    %2169 = vmatpush1.xpose.msra.mxu0 0.0
    %2170 = vmatprep.subr.mxu0 0.0
    %2171 = vmatpush1.xpose.msra.mxu0 0.0
    %2172 = vmatprep.mubr.f32.mxu0 0.0
    %2173 = vmatmul.mubr.f32.gmra.mrb[0].mxu0 %v2102
    %v2174 = vpop.f32.mrb[0].mxu0
    %v2175 = vadd.f32 0.0, %v2174
    %v2176 = vpop.f32.mrb[0].mxu0
    %2177 = vdwg.mxu0
    %v2178 = vmul.f32 %v2175, 0.35355338
    %v2179 = vsel %vm464, %v2178, -inf
    %2180 = vmax.xlane.f32.xlu0 %v2179
    %v2181 = vpop.xlane.xlu0 %2180
    %v2182 = vsub.f32 %v2178, %v2181
    %v2183 = vmul.f32 %v2182, 1.442695
    %v2184 = vpow.pop %v2183
    %2185 = vrot.lane.b32.xlu0 %v370, 104
    %v2186 = vpop.permute.xlu0 %2185
    %2187 = vrot.lane.b32.xlu0 %v375, 104
    %v2188 = vpop.permute.xlu0 %2187
    %v2192 = vsel %vm464, %v2184, 0
    %2194 = vmatprep.subr.mxu0 0.0
    %2195 = vmatpush1.msra.mxu0 %v2186
    %2196 = vmatprep.subr.mxu0 0.0
    %2197 = vmatpush1.msra.mxu0 %v2188
    %2198 = vmatprep.subr.mxu0 0.0
    %2199 = vmatpush1.msra.mxu0 0.0
    %2200 = vmatprep.subr.mxu0 0.0
    %2201 = vmatpush1.msra.mxu0 0.0
    %2202 = vmatprep.subr.mxu0 0.0
    %2203 = vmatpush1.msra.mxu0 0.0
    %2204 = vmatprep.subr.mxu0 0.0
    %2205 = vmatpush1.msra.mxu0 0.0
    %2206 = vmatprep.subr.mxu0 0.0
    %2207 = vmatpush1.msra.mxu0 0.0
    %2208 = vmatprep.subr.mxu0 0.0
    %2209 = vmatpush1.msra.mxu0 0.0
    %2210 = vmatprep.subr.mxu0 0.0
    %2211 = vmatpush1.msra.mxu0 0.0
    %2212 = vmatprep.subr.mxu0 0.0
    %2213 = vmatpush1.msra.mxu0 0.0
    %2214 = vmatprep.subr.mxu0 0.0
    %2215 = vmatpush1.msra.mxu0 0.0
    %2216 = vmatprep.subr.mxu0 0.0
    %2217 = vmatpush1.msra.mxu0 0.0
    %2218 = vmatprep.subr.mxu0 0.0
    %2219 = vmatpush1.msra.mxu0 0.0
    %2220 = vmatprep.subr.mxu0 0.0
    %2221 = vmatpush1.msra.mxu0 0.0
    %2222 = vmatprep.subr.mxu0 0.0
    %2223 = vmatpush1.msra.mxu0 0.0
    %2224 = vmatprep.subr.mxu0 0.0
    %2225 = vmatpush1.msra.mxu0 0.0
    %2226 = vmatprep.subr.mxu0 0.0
    %2227 = vmatpush1.msra.mxu0 0.0
    %2228 = vmatprep.subr.mxu0 0.0
    %2229 = vmatpush1.msra.mxu0 0.0
    %2230 = vmatprep.subr.mxu0 0.0
    %2231 = vmatpush1.msra.mxu0 0.0
    %2232 = vmatprep.subr.mxu0 0.0
    %2233 = vmatpush1.msra.mxu0 0.0
    %2234 = vmatprep.subr.mxu0 0.0
    %2235 = vmatpush1.msra.mxu0 0.0
    %2236 = vmatprep.subr.mxu0 0.0
    %2237 = vmatpush1.msra.mxu0 0.0
    %2238 = vmatprep.subr.mxu0 0.0
    %2239 = vmatpush1.msra.mxu0 0.0
    %2240 = vmatprep.subr.mxu0 0.0
    %2241 = vmatpush1.msra.mxu0 0.0
    %2242 = vmatprep.subr.mxu0 0.0
    %2243 = vmatpush1.msra.mxu0 0.0
    %2244 = vmatprep.subr.mxu0 0.0
    %2245 = vmatpush1.msra.mxu0 0.0
    %2246 = vmatprep.subr.mxu0 0.0
    %2247 = vmatpush1.msra.mxu0 0.0
    %2248 = vmatprep.subr.mxu0 0.0
    %2249 = vmatpush1.msra.mxu0 0.0
    %2250 = vmatprep.subr.mxu0 0.0
    %2251 = vmatpush1.msra.mxu0 0.0
    %2252 = vmatprep.subr.mxu0 0.0
    %2253 = vmatpush1.msra.mxu0 0.0
    %2254 = vmatprep.subr.mxu0 0.0
    %2255 = vmatpush1.msra.mxu0 0.0
    %2256 = vmatprep.subr.mxu0 0.0
    %2257 = vmatpush1.msra.mxu0 0.0
    %2258 = vmatprep.mubr.f32.mxu0 0.0
    %2259 = vmatmul.mubr.f32.gmra.mrb[0].mxu0 %v2192
    %v2260 = vpop.f32.mrb[0].mxu0
    %v2261 = vadd.f32 0.0, %v2260
    %v2262 = vpop.f32.mrb[0].mxu0
    %2263 = vdwg.mxu0
    %v2264 = vsel %vm464, %v2184, 0.0
    %2265 = vadd.xlane.f32.xlu0 %v2264
    %v2266 = vpop.xlane.xlu0 %2265
    %v2267 = vrcp.pop %v2266
    %v2268 = vmul.f32 %v2261, %v2267
    %v2270 = vsel %vm383, %v2268, 0
    %2272 = vmatprep.subr.mxu0 0.0
    %2273 = vmatpush1.msra.mxu0 %v382
    %2274 = vmatprep.subr.mxu0 0.0
    %2275 = vmatpush1.msra.mxu0 0.0
    %2276 = vmatprep.subr.mxu0 0.0
    %2277 = vmatpush1.msra.mxu0 0.0
    %2278 = vmatprep.subr.mxu0 0.0
    %2279 = vmatpush1.msra.mxu0 0.0
    %2280 = vmatprep.subr.mxu0 0.0
    %2281 = vmatpush1.msra.mxu0 0.0
    %2282 = vmatprep.subr.mxu0 0.0
    %2283 = vmatpush1.msra.mxu0 0.0
    %2284 = vmatprep.subr.mxu0 0.0
    %2285 = vmatpush1.msra.mxu0 0.0
    %2286 = vmatprep.subr.mxu0 0.0
    %2287 = vmatpush1.msra.mxu0 0.0
    %2288 = vmatprep.subr.mxu0 0.0
    %2289 = vmatpush1.msra.mxu0 0.0
    %2290 = vmatprep.subr.mxu0 0.0
    %2291 = vmatpush1.msra.mxu0 0.0
    %2292 = vmatprep.subr.mxu0 0.0
    %2293 = vmatpush1.msra.mxu0 0.0
    %2294 = vmatprep.subr.mxu0 0.0
    %2295 = vmatpush1.msra.mxu0 0.0
    %2296 = vmatprep.subr.mxu0 0.0
    %2297 = vmatpush1.msra.mxu0 0.0
    %2298 = vmatprep.subr.mxu0 0.0
    %2299 = vmatpush1.msra.mxu0 0.0
    %2300 = vmatprep.subr.mxu0 0.0
    %2301 = vmatpush1.msra.mxu0 0.0
    %2302 = vmatprep.subr.mxu0 0.0
    %2303 = vmatpush1.msra.mxu0 0.0
    %2304 = vmatprep.subr.mxu0 0.0
    %2305 = vmatpush1.msra.mxu0 0.0
    %2306 = vmatprep.subr.mxu0 0.0
    %2307 = vmatpush1.msra.mxu0 0.0
    %2308 = vmatprep.subr.mxu0 0.0
    %2309 = vmatpush1.msra.mxu0 0.0
    %2310 = vmatprep.subr.mxu0 0.0
    %2311 = vmatpush1.msra.mxu0 0.0
    %2312 = vmatprep.subr.mxu0 0.0
    %2313 = vmatpush1.msra.mxu0 0.0
    %2314 = vmatprep.subr.mxu0 0.0
    %2315 = vmatpush1.msra.mxu0 0.0
    %2316 = vmatprep.subr.mxu0 0.0
    %2317 = vmatpush1.msra.mxu0 0.0
    %2318 = vmatprep.subr.mxu0 0.0
    %2319 = vmatpush1.msra.mxu0 0.0
    %2320 = vmatprep.subr.mxu0 0.0
    %2321 = vmatpush1.msra.mxu0 0.0
    %2322 = vmatprep.subr.mxu0 0.0
    %2323 = vmatpush1.msra.mxu0 0.0
    %2324 = vmatprep.subr.mxu0 0.0
    %2325 = vmatpush1.msra.mxu0 0.0
    %2326 = vmatprep.subr.mxu0 0.0
    %2327 = vmatpush1.msra.mxu0 0.0
    %2328 = vmatprep.subr.mxu0 0.0
    %2329 = vmatpush1.msra.mxu0 0.0
    %2330 = vmatprep.subr.mxu0 0.0
    %2331 = vmatpush1.msra.mxu0 0.0
    %2332 = vmatprep.subr.mxu0 0.0
    %2333 = vmatpush1.msra.mxu0 0.0
    %2334 = vmatprep.subr.mxu0 0.0
    %2335 = vmatpush1.msra.mxu0 0.0
    %2336 = vmatprep.mubr.f32.mxu0 0.0
    %2337 = vmatmul.mubr.f32.gmra.mrb[0].mxu0 %v2270
    %v2338 = vpop.f32.mrb[0].mxu0
    %v2339 = vadd.f32 0.0, %v2338
    %v2340 = vpop.f32.mrb[0].mxu0
    %2341 = vdwg.mxu0
    %v2342 = vadd.f32 %v1848, %v2339
    %v2343 = vlaneseq
    %v2344 = vshrl.u32 %v2343, 7
    %v2345 = vsub.s32 0, %v2344
    %v2346 = vrot.slane %v76, %v2345
    %v2347 = vadd.f32 %v2095, %v2346
    %v2348 = vadd.f32 %v2342, %v2346
    %v2349 = vadd.f32 %v82, %v2347
    %v2350 = vadd.f32 %v83, %v2348
    %v2351 = vsel %vm96, %v2349, 0.0
    %2352 = vadd.xlane.f32.xlu0 %v2351
    %v2353 = vpop.xlane.xlu0 %2352
    %v2354 = vsel %vm96, %v2350, 0.0
    %2355 = vadd.xlane.f32.xlu0 %v2354
    %v2356 = vpop.xlane.xlu0 %2355
    %v2357 = vrcp.pop 32.0
    %v2358 = vmul.f32 %v2353, %v2357
    %v2359 = vmul.f32 %v2356, %v2357
    %v2360 = vsub.f32 %v2349, %v2358
    %v2361 = vsub.f32 %v2350, %v2359
    %v2362 = vmul.f32 %v2360, %v2360
    %v2363 = vmul.f32 %v2361, %v2361
    %v2364 = vsel %vm96, %v2362, 0.0
    %2365 = vadd.xlane.f32.xlu0 %v2364
    %v2366 = vpop.xlane.xlu0 %2365
    %v2367 = vsel %vm96, %v2363, 0.0
    %2368 = vadd.xlane.f32.xlu0 %v2367
    %v2369 = vpop.xlane.xlu0 %2368
    %v2370 = vmul.f32 %v2366, %v2357
    %v2371 = vmul.f32 %v2369, %v2357
    %v2372 = vadd.f32 %v2370, 1e-05
    %v2373 = vadd.f32 %v2371, 1e-05
    %v2374 = vrsqrt.pop %v2372
    %v2375 = vrsqrt.pop %v2373
    %v2376 = vmul.f32 %v2360, %v2374
    %v2377 = vmul.f32 %v2361, %v2375
    %v2378 = vlaneseq
    %v2379 = vshrl.u32 %v2378, 7
    %v2380 = vsub.s32 0, %v2379
    %v2381 = vrot.slane %v78, %v2380
    %v2382 = vmul.f32 %v2376, %v2381
    %v2383 = vmul.f32 %v2377, %v2381
    %v2384 = vlaneseq
    %v2385 = vshrl.u32 %v2384, 7
    %v2386 = vsub.s32 0, %v2385
    %v2387 = vrot.slane %v79, %v2386
    %v2388 = vadd.f32 %v2382, %v2387
    %v2389 = vadd.f32 %v2383, %v2387
    %s2390 = scalar_lea.vmem [#allocation7], 128
    %v2391 = vld [vmem:[%s2390] sm:$0xff]
    %v2392 = vld [vmem:[%s2390 + $0x8] sm:$0xff]
    %v2393 = vld [vmem:[%s2390 + $0x10] sm:$0xff]
    %v2394 = vld [vmem:[%s2390 + $0x18] sm:$0xff]
    %v2395 = vlaneseq
    %v2396 = vshrl.u32 %v2395, 7
    %v2397 = vsub.s32 0, %v2396
    %v2398 = vrot.slane %v77, %v2397
    %v2400 = vsel %vm96, %v2388, 0
    %v2403 = vsel %vm96, %v2389, 0
    %2405 = vmatprep.subr.mxu0 0.0
    %2406 = vmatpush1.msra.mxu0 %v2391
    %2407 = vmatprep.subr.mxu0 0.0
    %2408 = vmatpush1.msra.mxu0 %v2392
    %2409 = vmatprep.subr.mxu0 0.0
    %2410 = vmatpush1.msra.mxu0 %v2393
    %2411 = vmatprep.subr.mxu0 0.0
    %2412 = vmatpush1.msra.mxu0 %v2394
    %2413 = vmatprep.subr.mxu0 0.0
    %2414 = vmatpush1.msra.mxu0 0.0
    %2415 = vmatprep.subr.mxu0 0.0
    %2416 = vmatpush1.msra.mxu0 0.0
    %2417 = vmatprep.subr.mxu0 0.0
    %2418 = vmatpush1.msra.mxu0 0.0
    %2419 = vmatprep.subr.mxu0 0.0
    %2420 = vmatpush1.msra.mxu0 0.0
    %2421 = vmatprep.subr.mxu0 0.0
    %2422 = vmatpush1.msra.mxu0 0.0
    %2423 = vmatprep.subr.mxu0 0.0
    %2424 = vmatpush1.msra.mxu0 0.0
    %2425 = vmatprep.subr.mxu0 0.0
    %2426 = vmatpush1.msra.mxu0 0.0
    %2427 = vmatprep.subr.mxu0 0.0
    %2428 = vmatpush1.msra.mxu0 0.0
    %2429 = vmatprep.subr.mxu0 0.0
    %2430 = vmatpush1.msra.mxu0 0.0
    %2431 = vmatprep.subr.mxu0 0.0
    %2432 = vmatpush1.msra.mxu0 0.0
    %2433 = vmatprep.subr.mxu0 0.0
    %2434 = vmatpush1.msra.mxu0 0.0
    %2435 = vmatprep.subr.mxu0 0.0
    %2436 = vmatpush1.msra.mxu0 0.0
    %2437 = vmatprep.subr.mxu0 0.0
    %2438 = vmatpush1.msra.mxu0 0.0
    %2439 = vmatprep.subr.mxu0 0.0
    %2440 = vmatpush1.msra.mxu0 0.0
    %2441 = vmatprep.subr.mxu0 0.0
    %2442 = vmatpush1.msra.mxu0 0.0
    %2443 = vmatprep.subr.mxu0 0.0
    %2444 = vmatpush1.msra.mxu0 0.0
    %2445 = vmatprep.subr.mxu0 0.0
    %2446 = vmatpush1.msra.mxu0 0.0
    %2447 = vmatprep.subr.mxu0 0.0
    %2448 = vmatpush1.msra.mxu0 0.0
    %2449 = vmatprep.subr.mxu0 0.0
    %2450 = vmatpush1.msra.mxu0 0.0
    %2451 = vmatprep.subr.mxu0 0.0
    %2452 = vmatpush1.msra.mxu0 0.0
    %2453 = vmatprep.subr.mxu0 0.0
    %2454 = vmatpush1.msra.mxu0 0.0
    %2455 = vmatprep.subr.mxu0 0.0
    %2456 = vmatpush1.msra.mxu0 0.0
    %2457 = vmatprep.subr.mxu0 0.0
    %2458 = vmatpush1.msra.mxu0 0.0
    %2459 = vmatprep.subr.mxu0 0.0
    %2460 = vmatpush1.msra.mxu0 0.0
    %2461 = vmatprep.subr.mxu0 0.0
    %2462 = vmatpush1.msra.mxu0 0.0
    %2463 = vmatprep.subr.mxu0 0.0
    %2464 = vmatpush1.msra.mxu0 0.0
    %2465 = vmatprep.subr.mxu0 0.0
    %2466 = vmatpush1.msra.mxu0 0.0
    %2467 = vmatprep.subr.mxu0 0.0
    %2468 = vmatpush1.msra.mxu0 0.0
    %2469 = vmatprep.mubr.f32.mxu0 0.0
    %2470 = vmatmul.mubr.f32.gmra.mrb[0].mxu0 %v2400
    %v2471 = vpop.f32.mrb[0].mxu0
    %v2472 = vadd.f32 %v2398, %v2471
    %v2473 = vpop.f32.mrb[0].mxu0
    %2474 = vmatprep.mubr.f32.mxu0 0.0
    %2475 = vmatmul.mubr.f32.gmra.mrb[0].mxu0 %v2403
    %v2476 = vpop.f32.mrb[0].mxu0
    %v2477 = vadd.f32 %v2398, %v2476
    %v2478 = vpop.f32.mrb[0].mxu0
    %2479 = vdwg.mxu0
    %v2480 = vadd.f32 %v2388, %v2472
    %v2481 = vadd.f32 %v2389, %v2477
    %v2482 = vsel %vm96, %v2480, 0.0
    %2483 = vadd.xlane.f32.xlu0 %v2482
    %v2484 = vpop.xlane.xlu0 %2483
    %v2485 = vsel %vm96, %v2481, 0.0
    %2486 = vadd.xlane.f32.xlu0 %v2485
    %v2487 = vpop.xlane.xlu0 %2486
    %v2488 = vmul.f32 %v2484, %v2357
    %v2489 = vmul.f32 %v2487, %v2357
    %v2490 = vsub.f32 %v2480, %v2488
    %v2491 = vsub.f32 %v2481, %v2489
    %v2492 = vmul.f32 %v2490, %v2490
    %v2493 = vmul.f32 %v2491, %v2491
    %v2494 = vsel %vm96, %v2492, 0.0
    %2495 = vadd.xlane.f32.xlu0 %v2494
    %v2496 = vpop.xlane.xlu0 %2495
    %v2497 = vsel %vm96, %v2493, 0.0
    %2498 = vadd.xlane.f32.xlu0 %v2497
    %v2499 = vpop.xlane.xlu0 %2498
    %v2500 = vmul.f32 %v2496, %v2357
    %v2501 = vmul.f32 %v2499, %v2357
    %v2502 = vadd.f32 %v2500, 1e-05
    %v2503 = vadd.f32 %v2501, 1e-05
    %v2504 = vrsqrt.pop %v2502
    %v2505 = vrsqrt.pop %v2503
    %v2506 = vmul.f32 %v2490, %v2504
    %v2507 = vmul.f32 %v2491, %v2505
    %v2508 = vlaneseq
    %v2509 = vshrl.u32 %v2508, 7
    %v2510 = vsub.s32 0, %v2509
    %v2511 = vrot.slane %v80, %v2510
    %v2512 = vmul.f32 %v2506, %v2511
    %v2513 = vmul.f32 %v2507, %v2511
    %v2514 = vlaneseq
    %v2515 = vshrl.u32 %v2514, 7
    %v2516 = vsub.s32 0, %v2515
    %v2517 = vrot.slane %v81, %v2516
    %v2518 = vadd.f32 %v2512, %v2517
    %v2519 = vadd.f32 %v2513, %v2517
    %2520 = vst.msk [vmem:[#allocation10] sm:$0xff] %vm96, %v2518
    %2521 = vst.msk [vmem:[#allocation10 + $0x8] sm:$0xff] %vm96, %v2519
    // Predicated region
    $region34: #{tpu_custom_call.1} parent=1 // pred_check
      _
    $region35: #{tpu_custom_call.1} parent=1 // pred_check_branch
      %2523 = sbr.rel (0) target = $region37
    $region36: #{tpu_custom_call.1} parent=1 // pred_region
      %s2525 = ssub.s32 256, 256
      %2526 = vsyncadd [#allocation4], %s2525
      %s2527 = sshll.u32 [#allocation10], 4
      %s2528 = int_to_ptr.vmem [resolvable:$true] %s2527
      %2533 = dma.vmem_to_hbm [thread:$0]  %s2528, 256, %s4, [#allocation4], 128, 128, 8
    $region37: #{tpu_custom_call.1} parent=1 // pred_fallthru
      _
    // Predicated region
    $region38: #{tpu_custom_call.1} parent=1 // pred_check
      _
    $region39: #{tpu_custom_call.1} parent=1 // pred_check_branch
      %2535 = sbr.rel (0) target = $region41
    $region40: #{tpu_custom_call.1} parent=1 // pred_region
      %2536 = dma.done [#allocation4], 256
    $region41: #{tpu_custom_call.1} parent=1 // pred_fallthru
      _
    %2537 = vsyncpa [#allocation3], 1
    %2538 = vsyncpa [#allocation6], 1
    %2539 = vsyncpa [#allocation9], 1
    %2540 = vsyncpa [#allocation4], 1

</llo_original>
